<compile_context>
chip_gen: v7x
topology: tpu7x:2x2x1
jax: 0.10.0
libtpu: 0.0.40
codegen_flags: <defaults>
</compile_context>

<pallas_src>
import functools
import math

import jax
import jax.numpy as jnp
from jax import lax
from jax.experimental import pallas as pl
from jax.experimental.pallas import tpu as pltpu


def _round_up(x, m):
    return (x + m - 1) // m * m


def _resblock_kernel(x_ref, halo_ref, w1_ref, b1_ref, w2_ref, b2_ref, w3_ref, b3_ref,
                     o_ref, *, TT, K, pad, dilation, approx_gelu):
    # x_ref:    (1, TT, Cp)   current time tile (rows [t*TT, t*TT+TT) of the padded input)
    # halo_ref: (1, HR, Cp)   next HR rows (HR >= 2*pad) -> conv halo
    # w1_ref:   (K, Cp, Cp)   per-tap conv weights (in, out); w2_ref: (Cp, Cmp); w3_ref: (Cmp, Cp)
    # biases:   (1, Cp)/(1, Cmp)/(1, Cp) in f32
    f32 = jnp.float32
    win = jnp.concatenate([x_ref[0], halo_ref[0]], axis=0)          # (TT+HR, Cp), act dtype

    # residual = the un-shifted (center) rows, promoted to f32
    res = win[pad:pad + TT, :].astype(f32)                          # (TT, Cp)

    # --- c1: K accumulated MXU matmuls (one per tap). No (TT, K*Cp) unfold materialization;
    #     the only per-tap cost is a small sublane-shifted operand view. ---
    acc = jnp.dot(win[:TT, :], w1_ref[0], preferred_element_type=f32)
    for k in range(1, K):
        off = k * dilation
        acc = acc + jnp.dot(win[off:off + TT, :], w1_ref[k], preferred_element_type=f32)
    acc = acc + b1_ref[...].astype(f32)
    # norm=False (module default) -> Identity.
    # TODO(synk): ChannelNorm (norm=True path) not implemented.

    # --- c2: 1x1 conv == matmul, then GELU ---
    h = jnp.dot(acc.astype(w2_ref.dtype), w2_ref[...], preferred_element_type=f32)
    h = h + b2_ref[...].astype(f32)
    if approx_gelu:
        c = jnp.float32(math.sqrt(2.0 / math.pi))
        h = 0.5 * h * (1.0 + jnp.tanh(c * (h + jnp.float32(0.044715) * (h * h * h))))
    else:
        h = 0.5 * h * (1.0 + lax.erf(h * jnp.float32(1.0 / math.sqrt(2.0))))

    # --- c3: 1x1 conv back to Cp, plus bias and residual ---
    out = jnp.dot(h.astype(w3_ref.dtype), w3_ref[...], preferred_element_type=f32)
    out = out + b3_ref[...].astype(f32) + res
    o_ref[0] = out.astype(o_ref.dtype)


def resblock_pallas(x_ncl, params, *, kernel_size=7, mlp_mul=3, dilation=1,
                    t_tile=2048, use_bf16=True, approx_gelu=None):
    """x_ncl: (B, C, T) float32, PyTorch Conv1d layout. Returns (B, C, T)."""
    w1, b1, w2, b2, w3, b3 = params
    B, C, T = x_ncl.shape
    K = kernel_size
    pad = (K * dilation - dilation) // 2
    if 2 * pad != dilation * (K - 1):
        raise ValueError("resblock_pallas expects a 'same'-length conv "
                         "(dilation*(kernel_size-1) must be even, e.g. odd kernel_size).")
    if approx_gelu is None:
        approx_gelu = use_bf16        # perf path: tanh GELU on EUP; f32 path stays exact erf

    Cm = C * mlp_mul
    Cp = _round_up(C, 128)            # lane-dense channels
    Cmp = _round_up(Cm, 128)
    # TODO(synk): small-C repack (fold time/batch into lanes when C << 128) would recover the
    # ~Cp/C x zero-padding waste at tiny channel counts; not implemented here.

    mm_dtype = jnp.bfloat16 if use_bf16 else jnp.float32
    act_dtype = mm_dtype              # ship activations in matmul dtype (halves HBM in perf path)
    act_bytes = 2 if use_bf16 else 4
    f32 = jnp.float32

    sub = 16 if act_bytes == 2 else 8             # sublane packing (bf16 packs 16 rows / vreg)
    HR = max(sub, _round_up(2 * pad, sub))        # halo rows fetched per tile

    # VMEM-aware time-tile cap: big tiles amortize per-grid-step overhead, small enough for v7x.
    per_row = (2 * act_bytes + 2 * 4 + act_bytes + 3 * 4) * Cp + (4 + act_bytes) * Cmp
    budget = 20 * 1024 * 1024
    tt_cap = max(HR, (budget // max(per_row, 1)) // HR * HR)
    TT = min(t_tile, tt_cap, _round_up(T, HR))
    TT = max(HR, (TT // HR) * HR)                 # multiple of HR (needed by the halo index map)
    nT = -(-T // TT)
    Tr = nT * TT
    Lz = Tr + HR                                  # padded time length (>= Tr + 2*pad)

    # channels-last + single combined zero-pad (left conv pad, right round-up+halo, channel pad)
    # TODO(synk): these transpose/pad/cast passes are an extra HBM round trip forced by the NCL
    # interface; they disappear if the surrounding model is kept channels-last (B, T, C).
    x_btc = jnp.transpose(x_ncl, (0, 2, 1)).astype(act_dtype)                # (B, T, C)
    xz = jnp.pad(x_btc, ((0, 0), (pad, Lz - pad - T), (0, Cp - C)))          # (B, Lz, Cp)

    # weights: zero-pad channels, lay out for X @ W matmuls, ship in mm_dtype
    w1p = jnp.pad(w1, ((0, Cp - C), (0, Cp - C), (0, 0)))                    # (Cp_out, Cp_in, K)
    w1_t = jnp.transpose(w1p, (2, 1, 0)).astype(mm_dtype)                    # (K, Cp_in, Cp_out)
    w2_m = jnp.transpose(jnp.pad(w2[:, :, 0], ((0, Cmp - Cm), (0, Cp - C))),
                         (1, 0)).astype(mm_dtype)                            # (Cp, Cmp)
    w3_m = jnp.transpose(jnp.pad(w3[:, :, 0], ((0, Cp - C), (0, Cmp - Cm))),
                         (1, 0)).astype(mm_dtype)                            # (Cmp, Cp)
    b1_r = jnp.pad(b1, (0, Cp - C)).reshape(1, Cp).astype(f32)
    b2_r = jnp.pad(b2, (0, Cmp - Cm)).reshape(1, Cmp).astype(f32)
    b3_r = jnp.pad(b3, (0, Cp - C)).reshape(1, Cp).astype(f32)

    kernel = functools.partial(_resblock_kernel, TT=TT, K=K, pad=pad,
                               dilation=dilation, approx_gelu=approx_gelu)

    bpt = TT // HR                                # halo blocks per time tile
    flops = 2 * B * Tr * Cp * (K * Cp + 2 * Cmp)
    bytes_accessed = (2 * int(xz.size) * act_bytes + B * Tr * Cp * 4
                      + (int(w1_t.size) + int(w2_m.size) + int(w3_m.size)) * act_bytes)
    cost = pl.CostEstimate(flops=flops, transcendentals=B * Tr * Cmp,
                           bytes_accessed=bytes_accessed)

    out_btc = pl.pallas_call(
        kernel,
        out_shape=jax.ShapeDtypeStruct((B, Tr, Cp), x_ncl.dtype),
        grid_spec=pltpu.PrefetchScalarGridSpec(
            num_scalar_prefetch=0,
            grid=(B, nT),
            in_specs=[
                # main time tile and a small halo view of the same padded array
                pl.BlockSpec((1, TT, Cp), lambda b, t: (b, t, 0)),
                pl.BlockSpec((1, HR, Cp), lambda b, t: (b, (t + 1) * bpt, 0)),
                pl.BlockSpec((K, Cp, Cp), lambda b, t: (0, 0, 0)),           # w1 taps
                pl.BlockSpec((1, Cp), lambda b, t: (0, 0)),                  # b1
                pl.BlockSpec((Cp, Cmp), lambda b, t: (0, 0)),                # w2
                pl.BlockSpec((1, Cmp), lambda b, t: (0, 0)),                 # b2
                pl.BlockSpec((Cmp, Cp), lambda b, t: (0, 0)),                # w3
                pl.BlockSpec((1, Cp), lambda b, t: (0, 0)),                  # b3
            ],
            out_specs=pl.BlockSpec((1, TT, Cp), lambda b, t: (b, t, 0)),
        ),
        compiler_params=pltpu.CompilerParams(
            dimension_semantics=("parallel", "parallel"),
            vmem_limit_bytes=48 * 1024 * 1024),
        cost_estimate=cost,
    )(xz, xz, w1_t, b1_r, w2_m, b2_r, w3_m, b3_r)

    return jnp.transpose(out_btc[:, :T, :C], (0, 2, 1)).astype(x_ncl.dtype)  # back to (B, C, T)


def resblock_ref(x_ncl, params, *, kernel_size=7, mlp_mul=3, dilation=1):
    """Pure-JAX reference mirroring the PyTorch forward (NCL layout, exact erf GELU)."""
    w1, b1, w2, b2, w3, b3 = params
    pad = (kernel_size * dilation - dilation) // 2
    dn = ('NCH', 'OIH', 'NCH')
    y = lax.conv_general_dilated(x_ncl, w1, window_strides=(1,),
                                 padding=[(pad, pad)], rhs_dilation=(dilation,),
                                 dimension_numbers=dn) + b1[None, :, None]
    y = lax.conv_general_dilated(y, w2, window_strides=(1,), padding=[(0, 0)],
                                 dimension_numbers=dn) + b2[None, :, None]
    y = jax.nn.gelu(y, approximate=False)
    y = lax.conv_general_dilated(y, w3, window_strides=(1,), padding=[(0, 0)],
                                 dimension_numbers=dn) + b3[None, :, None]
    return y + x_ncl


def init_params(key, channels, kernel_size=7, mlp_mul=3):
    """Deterministic init with PyTorch Conv1d default (kaiming-uniform-ish) bounds."""
    C, K, Cm = channels, kernel_size, channels * mlp_mul
    ks = jax.random.split(key, 6)

    def u(k, shape, fan_in):
        bound = 1.0 / math.sqrt(fan_in)
        return jax.random.uniform(k, shape, jnp.float32, -bound, bound)

    w1 = u(ks[0], (C, C, K), C * K)
    b1 = u(ks[1], (C,), C * K)
    w2 = u(ks[2], (Cm, C, 1), C)
    b2 = u(ks[3], (Cm,), C)
    w3 = u(ks[4], (C, Cm, 1), Cm)
    b3 = u(ks[5], (C,), Cm)
    return (w1, b1, w2, b2, w3, b3)


if __name__ == "__main__":
    key = jax.random.PRNGKey(0)
    kx, kp, kx2 = jax.random.split(key, 3)

    # Primary: module-default config at small shapes, bf16 / tanh-GELU (perf) path.
    B, C, T = 2, 4, 16
    x = jax.random.normal(kx, (B, C, T), jnp.float32)
    params = init_params(kp, C)

    out = jax.block_until_ready(resblock_pallas(x, params))
    ref = resblock_ref(x, params)
    assert out.shape == (B, C, T)
    assert jnp.allclose(out, ref, atol=1e-1, rtol=1e-1), float(jnp.max(jnp.abs(out - ref)))

    # f32 path with multiple time tiles (exercises the halo logic), tight tolerance, exact GELU.
    x2 = jax.random.normal(kx2, (1, C, 40), jnp.float32)
    out2 = jax.block_until_ready(resblock_pallas(x2, params, t_tile=16, use_bf16=False))
    ref2 = resblock_ref(x2, params)
    assert out2.shape == (1, C, 40)
    assert jnp.allclose(out2, ref2, atol=2e-4, rtol=2e-4), float(jnp.max(jnp.abs(out2 - ref2)))

    print("KERNEL_OK")
</pallas_src>

<mosaic_0001>
module attributes {stable_mosaic.version = 11 : i64} {
  func.func @_resblock_kernel(%arg0: i32, %arg1: i32, %arg2: memref<1x16x128xbf16, #tpu.memory_space<vmem>>, %arg3: memref<1x16x128xbf16, #tpu.memory_space<vmem>>, %arg4: memref<7x128x128xbf16, #tpu.memory_space<vmem>>, %arg5: memref<1x128xf32, #tpu.memory_space<vmem>>, %arg6: memref<128x128xbf16, #tpu.memory_space<vmem>>, %arg7: memref<1x128xf32, #tpu.memory_space<vmem>>, %arg8: memref<128x128xbf16, #tpu.memory_space<vmem>>, %arg9: memref<1x128xf32, #tpu.memory_space<vmem>>, %arg10: memref<1x16x128xf32, #tpu.memory_space<vmem>>) attributes {dimension_semantics = [#tpu.dimension_semantics<parallel>, #tpu.dimension_semantics<parallel>], iteration_bounds = array<i64: 2, 1>, scalar_prefetch = 0 : i64, scratch_operands = 0 : i64, tpu.core_type = #tpu.core_type<tc>, window_params = [{transform_indices = @transform_0, window_bounds = array<i64: 1, 16, 128>}, {transform_indices = @transform_1, window_bounds = array<i64: 1, 16, 128>}, {pipeline_mode = #tpu.pipeline_mode<synchronous>, transform_indices = @transform_2, window_bounds = array<i64: 7, 128, 128>}, {pipeline_mode = #tpu.pipeline_mode<synchronous>, transform_indices = @transform_3, window_bounds = array<i64: 1, 128>}, {pipeline_mode = #tpu.pipeline_mode<synchronous>, transform_indices = @transform_4, window_bounds = array<i64: 128, 128>}, {pipeline_mode = #tpu.pipeline_mode<synchronous>, transform_indices = @transform_5, window_bounds = array<i64: 1, 128>}, {pipeline_mode = #tpu.pipeline_mode<synchronous>, transform_indices = @transform_6, window_bounds = array<i64: 128, 128>}, {pipeline_mode = #tpu.pipeline_mode<synchronous>, transform_indices = @transform_7, window_bounds = array<i64: 1, 128>}, {transform_indices = @transform_8, window_bounds = array<i64: 1, 16, 128>}]} {
    %c0 = arith.constant 0 : index
    %c0_0 = arith.constant 0 : index
    %c0_1 = arith.constant 0 : index
    %0 = vector.load %arg2[%c0, %c0_0, %c0_1] : memref<1x16x128xbf16, #tpu.memory_space<vmem>>, vector<1x16x128xbf16>
    %1 = vector.shape_cast %0 : vector<1x16x128xbf16> to vector<16x128xbf16>
    %c0_2 = arith.constant 0 : index
    %c0_3 = arith.constant 0 : index
    %c0_4 = arith.constant 0 : index
    %2 = vector.load %arg3[%c0_2, %c0_3, %c0_4] : memref<1x16x128xbf16, #tpu.memory_space<vmem>>, vector<1x16x128xbf16>
    %3 = vector.shape_cast %2 : vector<1x16x128xbf16> to vector<16x128xbf16>
    %4 = tpu.concatenate %1, %3 in 0 : vector<16x128xbf16>, vector<16x128xbf16> -> vector<32x128xbf16>
    %5 = vector.extract_strided_slice %4 {offsets = [3, 0], sizes = [16, 128], strides = [1, 1]} : vector<32x128xbf16> to vector<16x128xbf16>
    %6 = arith.extf %5 : vector<16x128xbf16> to vector<16x128xf32>
    %7 = vector.extract_strided_slice %4 {offsets = [0, 0], sizes = [16, 128], strides = [1, 1]} : vector<32x128xbf16> to vector<16x128xbf16>
    %c0_5 = arith.constant 0 : index
    %c0_6 = arith.constant 0 : index
    %c0_7 = arith.constant 0 : index
    %8 = vector.load %arg4[%c0_5, %c0_6, %c0_7] : memref<7x128x128xbf16, #tpu.memory_space<vmem>>, vector<1x128x128xbf16>
    %9 = vector.shape_cast %8 : vector<1x128x128xbf16> to vector<128x128xbf16>
    %cst = arith.constant dense<0.000000e+00> : vector<16x128xf32>
    %10 = tpu.matmul %7, %9, %cst {dimension_numbers = #tpu.dot_dimension_numbers<[1], [0], [0], [1], [0, 0, 1, 1], [], []>} : vector<16x128xbf16>, vector<128x128xbf16>, vector<16x128xf32> -> vector<16x128xf32>
    %11 = vector.extract_strided_slice %4 {offsets = [1, 0], sizes = [16, 128], strides = [1, 1]} : vector<32x128xbf16> to vector<16x128xbf16>
    %c1 = arith.constant 1 : index
    %c0_8 = arith.constant 0 : index
    %c0_9 = arith.constant 0 : index
    %12 = vector.load %arg4[%c1, %c0_8, %c0_9] : memref<7x128x128xbf16, #tpu.memory_space<vmem>>, vector<1x128x128xbf16>
    %13 = vector.shape_cast %12 : vector<1x128x128xbf16> to vector<128x128xbf16>
    %cst_10 = arith.constant dense<0.000000e+00> : vector<16x128xf32>
    %14 = tpu.matmul %11, %13, %cst_10 {dimension_numbers = #tpu.dot_dimension_numbers<[1], [0], [0], [1], [0, 0, 1, 1], [], []>} : vector<16x128xbf16>, vector<128x128xbf16>, vector<16x128xf32> -> vector<16x128xf32>
    %15 = arith.addf %10, %14 : vector<16x128xf32>
    %16 = vector.extract_strided_slice %4 {offsets = [2, 0], sizes = [16, 128], strides = [1, 1]} : vector<32x128xbf16> to vector<16x128xbf16>
    %c2 = arith.constant 2 : index
    %c0_11 = arith.constant 0 : index
    %c0_12 = arith.constant 0 : index
    %17 = vector.load %arg4[%c2, %c0_11, %c0_12] : memref<7x128x128xbf16, #tpu.memory_space<vmem>>, vector<1x128x128xbf16>
    %18 = vector.shape_cast %17 : vector<1x128x128xbf16> to vector<128x128xbf16>
    %cst_13 = arith.constant dense<0.000000e+00> : vector<16x128xf32>
    %19 = tpu.matmul %16, %18, %cst_13 {dimension_numbers = #tpu.dot_dimension_numbers<[1], [0], [0], [1], [0, 0, 1, 1], [], []>} : vector<16x128xbf16>, vector<128x128xbf16>, vector<16x128xf32> -> vector<16x128xf32>
    %20 = arith.addf %15, %19 : vector<16x128xf32>
    %21 = vector.extract_strided_slice %4 {offsets = [3, 0], sizes = [16, 128], strides = [1, 1]} : vector<32x128xbf16> to vector<16x128xbf16>
    %c3 = arith.constant 3 : index
    %c0_14 = arith.constant 0 : index
    %c0_15 = arith.constant 0 : index
    %22 = vector.load %arg4[%c3, %c0_14, %c0_15] : memref<7x128x128xbf16, #tpu.memory_space<vmem>>, vector<1x128x128xbf16>
    %23 = vector.shape_cast %22 : vector<1x128x128xbf16> to vector<128x128xbf16>
    %cst_16 = arith.constant dense<0.000000e+00> : vector<16x128xf32>
    %24 = tpu.matmul %21, %23, %cst_16 {dimension_numbers = #tpu.dot_dimension_numbers<[1], [0], [0], [1], [0, 0, 1, 1], [], []>} : vector<16x128xbf16>, vector<128x128xbf16>, vector<16x128xf32> -> vector<16x128xf32>
    %25 = arith.addf %20, %24 : vector<16x128xf32>
    %26 = vector.extract_strided_slice %4 {offsets = [4, 0], sizes = [16, 128], strides = [1, 1]} : vector<32x128xbf16> to vector<16x128xbf16>
    %c4 = arith.constant 4 : index
    %c0_17 = arith.constant 0 : index
    %c0_18 = arith.constant 0 : index
    %27 = vector.load %arg4[%c4, %c0_17, %c0_18] : memref<7x128x128xbf16, #tpu.memory_space<vmem>>, vector<1x128x128xbf16>
    %28 = vector.shape_cast %27 : vector<1x128x128xbf16> to vector<128x128xbf16>
    %cst_19 = arith.constant dense<0.000000e+00> : vector<16x128xf32>
    %29 = tpu.matmul %26, %28, %cst_19 {dimension_numbers = #tpu.dot_dimension_numbers<[1], [0], [0], [1], [0, 0, 1, 1], [], []>} : vector<16x128xbf16>, vector<128x128xbf16>, vector<16x128xf32> -> vector<16x128xf32>
    %30 = arith.addf %25, %29 : vector<16x128xf32>
    %31 = vector.extract_strided_slice %4 {offsets = [5, 0], sizes = [16, 128], strides = [1, 1]} : vector<32x128xbf16> to vector<16x128xbf16>
    %c5 = arith.constant 5 : index
    %c0_20 = arith.constant 0 : index
    %c0_21 = arith.constant 0 : index
    %32 = vector.load %arg4[%c5, %c0_20, %c0_21] : memref<7x128x128xbf16, #tpu.memory_space<vmem>>, vector<1x128x128xbf16>
    %33 = vector.shape_cast %32 : vector<1x128x128xbf16> to vector<128x128xbf16>
    %cst_22 = arith.constant dense<0.000000e+00> : vector<16x128xf32>
    %34 = tpu.matmul %31, %33, %cst_22 {dimension_numbers = #tpu.dot_dimension_numbers<[1], [0], [0], [1], [0, 0, 1, 1], [], []>} : vector<16x128xbf16>, vector<128x128xbf16>, vector<16x128xf32> -> vector<16x128xf32>
    %35 = arith.addf %30, %34 : vector<16x128xf32>
    %36 = vector.extract_strided_slice %4 {offsets = [6, 0], sizes = [16, 128], strides = [1, 1]} : vector<32x128xbf16> to vector<16x128xbf16>
    %c6 = arith.constant 6 : index
    %c0_23 = arith.constant 0 : index
    %c0_24 = arith.constant 0 : index
    %37 = vector.load %arg4[%c6, %c0_23, %c0_24] : memref<7x128x128xbf16, #tpu.memory_space<vmem>>, vector<1x128x128xbf16>
    %38 = vector.shape_cast %37 : vector<1x128x128xbf16> to vector<128x128xbf16>
    %cst_25 = arith.constant dense<0.000000e+00> : vector<16x128xf32>
    %39 = tpu.matmul %36, %38, %cst_25 {dimension_numbers = #tpu.dot_dimension_numbers<[1], [0], [0], [1], [0, 0, 1, 1], [], []>} : vector<16x128xbf16>, vector<128x128xbf16>, vector<16x128xf32> -> vector<16x128xf32>
    %40 = arith.addf %35, %39 : vector<16x128xf32>
    %c0_26 = arith.constant 0 : index
    %c0_27 = arith.constant 0 : index
    %41 = vector.load %arg5[%c0_26, %c0_27] : memref<1x128xf32, #tpu.memory_space<vmem>>, vector<1x128xf32>
    %42 = vector.broadcast %41 : vector<1x128xf32> to vector<16x128xf32>
    %43 = arith.addf %40, %42 : vector<16x128xf32>
    %44 = arith.truncf %43 : vector<16x128xf32> to vector<16x128xbf16>
    %c0_28 = arith.constant 0 : index
    %c0_29 = arith.constant 0 : index
    %45 = vector.load %arg6[%c0_28, %c0_29] : memref<128x128xbf16, #tpu.memory_space<vmem>>, vector<128x128xbf16>
    %cst_30 = arith.constant dense<0.000000e+00> : vector<16x128xf32>
    %46 = tpu.matmul %44, %45, %cst_30 {dimension_numbers = #tpu.dot_dimension_numbers<[1], [0], [0], [1], [0, 0, 1, 1], [], []>} : vector<16x128xbf16>, vector<128x128xbf16>, vector<16x128xf32> -> vector<16x128xf32>
    %c0_31 = arith.constant 0 : index
    %c0_32 = arith.constant 0 : index
    %47 = vector.load %arg7[%c0_31, %c0_32] : memref<1x128xf32, #tpu.memory_space<vmem>>, vector<1x128xf32>
    %48 = vector.broadcast %47 : vector<1x128xf32> to vector<16x128xf32>
    %49 = arith.addf %46, %48 : vector<16x128xf32>
    %cst_33 = arith.constant 5.000000e-01 : f32
    %50 = vector.broadcast %cst_33 : f32 to vector<16x128xf32>
    %51 = arith.mulf %50, %49 : vector<16x128xf32>
    %52 = arith.mulf %49, %49 : vector<16x128xf32>
    %53 = arith.mulf %52, %49 : vector<16x128xf32>
    %cst_34 = arith.constant 4.471500e-02 : f32
    %54 = vector.broadcast %cst_34 : f32 to vector<16x128xf32>
    %55 = arith.mulf %54, %53 : vector<16x128xf32>
    %56 = arith.addf %49, %55 : vector<16x128xf32>
    %cst_35 = arith.constant 0.797884583 : f32
    %57 = vector.broadcast %cst_35 : f32 to vector<16x128xf32>
    %58 = arith.mulf %57, %56 : vector<16x128xf32>
    %59 = math.tanh %58 : vector<16x128xf32>
    %cst_36 = arith.constant 1.000000e+00 : f32
    %60 = vector.broadcast %cst_36 : f32 to vector<16x128xf32>
    %61 = arith.addf %60, %59 : vector<16x128xf32>
    %62 = arith.mulf %51, %61 : vector<16x128xf32>
    %63 = arith.truncf %62 : vector<16x128xf32> to vector<16x128xbf16>
    %c0_37 = arith.constant 0 : index
    %c0_38 = arith.constant 0 : index
    %64 = vector.load %arg8[%c0_37, %c0_38] : memref<128x128xbf16, #tpu.memory_space<vmem>>, vector<128x128xbf16>
    %cst_39 = arith.constant dense<0.000000e+00> : vector<16x128xf32>
    %65 = tpu.matmul %63, %64, %cst_39 {dimension_numbers = #tpu.dot_dimension_numbers<[1], [0], [0], [1], [0, 0, 1, 1], [], []>} : vector<16x128xbf16>, vector<128x128xbf16>, vector<16x128xf32> -> vector<16x128xf32>
    %c0_40 = arith.constant 0 : index
    %c0_41 = arith.constant 0 : index
    %66 = vector.load %arg9[%c0_40, %c0_41] : memref<1x128xf32, #tpu.memory_space<vmem>>, vector<1x128xf32>
    %67 = vector.broadcast %66 : vector<1x128xf32> to vector<16x128xf32>
    %68 = arith.addf %65, %67 : vector<16x128xf32>
    %69 = arith.addf %68, %6 : vector<16x128xf32>
    %c0_42 = arith.constant 0 : index
    %c0_43 = arith.constant 0 : index
    %c0_44 = arith.constant 0 : index
    %70 = vector.load %arg10[%c0_42, %c0_43, %c0_44] : memref<1x16x128xf32, #tpu.memory_space<vmem>>, vector<1x16x128xf32>
    %71 = vector.shape_cast %70 : vector<1x16x128xf32> to vector<16x128xf32>
    %72 = vector.shape_cast %69 : vector<16x128xf32> to vector<1x16x128xf32>
    tpu.vector_store %arg10[%c0_42, %c0_43, %c0_44], %72 {strides = array<i32>} : memref<1x16x128xf32, #tpu.memory_space<vmem>>, vector<1x16x128xf32>,
    return
  }
  func.func @transform_0(%arg0: i32, %arg1: i32) -> (i32, i32, i32) {
    %c0_i32 = arith.constant 0 : i32
    %c0_i32_0 = arith.constant 0 : i32
    return %arg0, %arg1, %c0_i32 : i32, i32, i32
  }
  func.func @transform_1(%arg0: i32, %arg1: i32) -> (i32, i32, i32) {
    %c1_i32 = arith.constant 1 : i32
    %0 = arith.addi %arg1, %c1_i32 : i32
    %c1_i32_0 = arith.constant 1 : i32
    %1 = arith.muli %0, %c1_i32_0 : i32
    %c0_i32 = arith.constant 0 : i32
    %c0_i32_1 = arith.constant 0 : i32
    return %arg0, %1, %c0_i32 : i32, i32, i32
  }
  func.func @transform_2(%arg0: i32, %arg1: i32) -> (i32, i32, i32) {
    %c0_i32 = arith.constant 0 : i32
    %c0_i32_0 = arith.constant 0 : i32
    %c0_i32_1 = arith.constant 0 : i32
    %c0_i32_2 = arith.constant 0 : i32
    return %c0_i32, %c0_i32_0, %c0_i32_1 : i32, i32, i32
  }
  func.func @transform_3(%arg0: i32, %arg1: i32) -> (i32, i32) {
    %c0_i32 = arith.constant 0 : i32
    %c0_i32_0 = arith.constant 0 : i32
    %c0_i32_1 = arith.constant 0 : i32
    return %c0_i32, %c0_i32_0 : i32, i32
  }
  func.func @transform_4(%arg0: i32, %arg1: i32) -> (i32, i32) {
    %c0_i32 = arith.constant 0 : i32
    %c0_i32_0 = arith.constant 0 : i32
    %c0_i32_1 = arith.constant 0 : i32
    return %c0_i32, %c0_i32_0 : i32, i32
  }
  func.func @transform_5(%arg0: i32, %arg1: i32) -> (i32, i32) {
    %c0_i32 = arith.constant 0 : i32
    %c0_i32_0 = arith.constant 0 : i32
    %c0_i32_1 = arith.constant 0 : i32
    return %c0_i32, %c0_i32_0 : i32, i32
  }
  func.func @transform_6(%arg0: i32, %arg1: i32) -> (i32, i32) {
    %c0_i32 = arith.constant 0 : i32
    %c0_i32_0 = arith.constant 0 : i32
    %c0_i32_1 = arith.constant 0 : i32
    return %c0_i32, %c0_i32_0 : i32, i32
  }
  func.func @transform_7(%arg0: i32, %arg1: i32) -> (i32, i32) {
    %c0_i32 = arith.constant 0 : i32
    %c0_i32_0 = arith.constant 0 : i32
    %c0_i32_1 = arith.constant 0 : i32
    return %c0_i32, %c0_i32_0 : i32, i32
  }
  func.func @transform_8(%arg0: i32, %arg1: i32) -> (i32, i32, i32) {
    %c0_i32 = arith.constant 0 : i32
    %c0_i32_0 = arith.constant 0 : i32
    return %arg0, %arg1, %c0_i32 : i32, i32, i32
  }
}

</mosaic_0001>

<llo_original>
// kernel: tpu_custom_call.1
$region0: #{tpu_custom_call.1}
  #allocation0 [shape = 'u32[]', space=smem, size = 0x4, offset = 0x4, fixed_abs, tag = 'smem constant byte address 0x4 - core index']
  #allocation1 [shape = 'u32[144,128]{1,0:T(1,128)}', space=vmem, size = 0x12000, scoped, tag = 'internal scratch']
  %s0 = inlined_call_operand.hbm [shape: bf16[2,32,128], index: 0, kind: input, shape index: {}]
  %s1 = inlined_call_operand.hbm [shape: bf16[2,32,128], index: 1, kind: input, shape index: {}]
  %s2 = inlined_call_operand.hbm [shape: bf16[7,128,128], index: 2, kind: input, shape index: {}]
  %s3 = inlined_call_operand.vmem [shape: f32[1,128], index: 3, kind: input, shape index: {}]
  %s4 = inlined_call_operand.hbm [shape: bf16[128,128], index: 4, kind: input, shape index: {}]
  %s5 = inlined_call_operand.vmem [shape: f32[1,128], index: 5, kind: input, shape index: {}]
  %s6 = inlined_call_operand.hbm [shape: bf16[128,128], index: 6, kind: input, shape index: {}]
  %s7 = inlined_call_operand.vmem [shape: f32[1,128], index: 7, kind: input, shape index: {}]
  %s8 = inlined_call_operand.hbm [shape: f32[2,16,128], index: 8, kind: output, shape index: {}]
  %s9 = sld [smem:[#allocation0]]
  $region85: #{tpu_custom_call.1} parent=0
    _
  %s11 = ssub.s32 1, %s9
  %s12 = scalar_select 0, %s11, %s9
  $region1: #{tpu_custom_call.1} parent=0
    #allocation2 [shape = 'u8[8192]{0}', space=vmem, size = 0x2000, scoped, tag = 'input window, operand 0']
    #allocation3 [shape = 's32[2]{0}', space=sflag, size = 0x8, scoped, tag = 'scoped memory for tpu_custom_call.1']
    #allocation4 [shape = 's32[2]{0}', space=sflag, size = 0x8, scoped, tag = 'scoped memory for tpu_custom_call.1']
    #allocation5 [shape = 'u8[8192]{0}', space=vmem, size = 0x2000, scoped, tag = 'input window, operand 1']
    #allocation6 [shape = 's32[2]{0}', space=sflag, size = 0x8, scoped, tag = 'scoped memory for tpu_custom_call.1']
    #allocation7 [shape = 'u8[229376]{0}', space=vmem, size = 0x38000, scoped, tag = 'input window, operand 2, single buffered']
    #allocation8 [shape = 'u8[32768]{0}', space=vmem, size = 0x8000, scoped, tag = 'input window, operand 4, single buffered']
    #allocation9 [shape = 's32[1]{0}', space=sflag, size = 0x4, scoped, tag = 'scoped memory for tpu_custom_call.1']
    #allocation10 [shape = 'u8[32768]{0}', space=vmem, size = 0x8000, scoped, tag = 'input window, operand 6, single buffered']
    #allocation11 [shape = 'u8[16384]{0}', space=vmem, size = 0x4000, scoped, tag = 'output window, operand 0']
    %13 = vsyncpa [#allocation3], 0
    %s14 = scalar_lea.sflag [#allocation3], 1
    %15 = vsyncpa %s14, 0
    %16 = vsyncpa [#allocation6], 0
    %s17 = scalar_lea.sflag [#allocation6], 1
    %18 = vsyncpa %s17, 0
    %19 = vsyncpa [#allocation9], 0
    %20 = vsyncpa [#allocation4], 0
    %s21 = scalar_lea.sflag [#allocation4], 1
    %22 = vsyncpa %s21, 0
    loop: start=0, step=1, limit=4
    $region2: #{tpu_custom_call.1} parent=1 // loop_pre_header
      _
    $region3: #{tpu_custom_call.1} parent=1 // loop_header
      %s24 = sphi 0, %s28
      %p25 = scmp.ge.s32.totalorder %s24, 4
      %s31 = sphi 0, %s43
      %s32 = sphi 0, %s39
      %s33 = sphi 0, %s31
      %s34 = sphi 0, %s32
      %s35 = sphi 0, %s33
      %s36 = sphi 0, %s34
      %s48 = sphi 0, %s50
      %s51 = sphi 0, %s48
      %s52 = sphi 0, %s51
      %s68 = sphi 0, %s52
      %s78 = sphi 0, %s80
      %s81 = sphi 0, %s78
      %s82 = sphi 0, %s81
      %s98 = sphi 0, %s82
      %s102 = sphi 0, %s102
      %s104 = sphi 0, %s102
      %s105 = sphi 0, %s104
      %s119 = sphi 0, %s105
      %s123 = sphi 0, %s123
      %s125 = sphi 0, %s123
      %s126 = sphi 0, %s125
      %s140 = sphi 0, %s126
      %s144 = sphi 0, %s144
      %s146 = sphi 0, %s144
      %s147 = sphi 0, %s146
      %s161 = sphi 0, %s147
      %s165 = sphi 0, %s165
      %s167 = sphi 0, %s165
      %s168 = sphi 0, %s167
      %s182 = sphi 0, %s168
      %s186 = sphi 0, %s186
      %s188 = sphi 0, %s186
      %s189 = sphi 0, %s188
      %s203 = sphi 0, %s189
      %s207 = sphi 0, %s207
      %s209 = sphi 0, %s207
      %s210 = sphi 0, %s209
      %s224 = sphi 0, %s210
      %s232 = sphi 0, %s234
      %s235 = sphi 0, %s232
      %s236 = sphi 0, %s235
      %s252 = sphi 0, %s236
    $region4: #{tpu_custom_call.1} parent=1 // loop_header_branch
      %27 = sbr.rel (%p25) target = $region8
    $region5: #{tpu_custom_call.1} parent=1 // loop_body
      %s29 = ssub.s32 %s24, 1
      %s30 = ssub.s32 %s24, 2
      %s37 = sadd.s32 1, %s32
      %p38 = scmp.ge.s32.totalorder %s37, 1
      %s39 = scalar_select %p38, 0, %s37
      %s40 = sadd.s32 1, %s31
      %s41 = scalar_select %p38, %s40, %s31
      %p42 = scmp.ge.s32.totalorder %s41, 2
      %s43 = scalar_select %p42, 0, %s41
      %s44 = ssub.s32 %s31, %s43
      %s45 = ssub.s32 %s32, %s39
      %s46 = sor.u32 %s44, %s45
      %p47 = scmp.eq.s32.totalorder %s46, 0
      %s49 = sadd.s32 %s48, 1
      %s50 = scalar_select %p47, %s48, %s49
      %p53 = pneg %p47
      %p54 = scmp.eq.s32.totalorder %s24, 1
      %p55 = por %p53, %p54
      %p56 = scmp.ne.s32.totalorder %s48, %s51
      %p57 = scmp.eq.s32.totalorder %s24, 0
      %p58 = por %p56, %p57
      %p59 = scmp.ne.s32.totalorder %s48, %s51
      %p60 = scmp.eq.s32.totalorder %s29, 1
      %p61 = por %p59, %p60
      %p62 = scmp.ne.s32.totalorder %s51, %s52
      %p63 = scmp.eq.s32.totalorder %s29, 0
      %p64 = por %p62, %p63
      %p65 = scmp.ne.s32.totalorder %s51, %s52
      %p66 = scmp.eq.s32.totalorder %s30, 1
      %p67 = por %p65, %p66
      %p69 = scmp.ne.s32.totalorder %s52, %s68
      %p70 = scmp.eq.s32.totalorder %s30, 0
      %p71 = por %p69, %p70
      %s72 = sadd.s32 %s32, 1
      %s73 = sadd.s32 %s39, 1
      %s74 = ssub.s32 %s31, %s43
      %s75 = ssub.s32 %s72, %s73
      %s76 = sor.u32 %s74, %s75
      %p77 = scmp.eq.s32.totalorder %s76, 0
      %s79 = sadd.s32 %s78, 1
      %s80 = scalar_select %p77, %s78, %s79
      %p83 = pneg %p77
      %p84 = scmp.eq.s32.totalorder %s24, 1
      %p85 = por %p83, %p84
      %p86 = scmp.ne.s32.totalorder %s78, %s81
      %p87 = scmp.eq.s32.totalorder %s24, 0
      %p88 = por %p86, %p87
      %p89 = scmp.ne.s32.totalorder %s78, %s81
      %p90 = scmp.eq.s32.totalorder %s29, 1
      %p91 = por %p89, %p90
      %p92 = scmp.ne.s32.totalorder %s81, %s82
      %p93 = scmp.eq.s32.totalorder %s29, 0
      %p94 = por %p92, %p93
      %p95 = scmp.ne.s32.totalorder %s81, %s82
      %p96 = scmp.eq.s32.totalorder %s30, 1
      %p97 = por %p95, %p96
      %p99 = scmp.ne.s32.totalorder %s82, %s98
      %p100 = scmp.eq.s32.totalorder %s30, 0
      %p101 = por %p99, %p100
      %s103 = sadd.s32 %s102, 1
      %p106 = scmp.eq.s32.totalorder %s24, 1
      %p107 = scmp.ne.s32.totalorder %s102, %s104
      %p108 = scmp.eq.s32.totalorder %s24, 0
      %p109 = por %p107, %p108
      %p110 = scmp.ne.s32.totalorder %s102, %s104
      %p111 = scmp.eq.s32.totalorder %s29, 1
      %p112 = por %p110, %p111
      %p113 = scmp.ne.s32.totalorder %s104, %s105
      %p114 = scmp.eq.s32.totalorder %s29, 0
      %p115 = por %p113, %p114
      %p116 = scmp.ne.s32.totalorder %s104, %s105
      %p117 = scmp.eq.s32.totalorder %s30, 1
      %p118 = por %p116, %p117
      %p120 = scmp.ne.s32.totalorder %s105, %s119
      %p121 = scmp.eq.s32.totalorder %s30, 0
      %p122 = por %p120, %p121
      %s124 = sadd.s32 %s123, 1
      %p127 = scmp.eq.s32.totalorder %s24, 1
      %p128 = scmp.ne.s32.totalorder %s123, %s125
      %p129 = scmp.eq.s32.totalorder %s24, 0
      %p130 = por %p128, %p129
      %p131 = scmp.ne.s32.totalorder %s123, %s125
      %p132 = scmp.eq.s32.totalorder %s29, 1
      %p133 = por %p131, %p132
      %p134 = scmp.ne.s32.totalorder %s125, %s126
      %p135 = scmp.eq.s32.totalorder %s29, 0
      %p136 = por %p134, %p135
      %p137 = scmp.ne.s32.totalorder %s125, %s126
      %p138 = scmp.eq.s32.totalorder %s30, 1
      %p139 = por %p137, %p138
      %p141 = scmp.ne.s32.totalorder %s126, %s140
      %p142 = scmp.eq.s32.totalorder %s30, 0
      %p143 = por %p141, %p142
      %s145 = sadd.s32 %s144, 1
      %p148 = scmp.eq.s32.totalorder %s24, 1
      %p149 = scmp.ne.s32.totalorder %s144, %s146
      %p150 = scmp.eq.s32.totalorder %s24, 0
      %p151 = por %p149, %p150
      %p152 = scmp.ne.s32.totalorder %s144, %s146
      %p153 = scmp.eq.s32.totalorder %s29, 1
      %p154 = por %p152, %p153
      %p155 = scmp.ne.s32.totalorder %s146, %s147
      %p156 = scmp.eq.s32.totalorder %s29, 0
      %p157 = por %p155, %p156
      %p158 = scmp.ne.s32.totalorder %s146, %s147
      %p159 = scmp.eq.s32.totalorder %s30, 1
      %p160 = por %p158, %p159
      %p162 = scmp.ne.s32.totalorder %s147, %s161
      %p163 = scmp.eq.s32.totalorder %s30, 0
      %p164 = por %p162, %p163
      %s166 = sadd.s32 %s165, 1
      %p169 = scmp.eq.s32.totalorder %s24, 1
      %p170 = scmp.ne.s32.totalorder %s165, %s167
      %p171 = scmp.eq.s32.totalorder %s24, 0
      %p172 = por %p170, %p171
      %p173 = scmp.ne.s32.totalorder %s165, %s167
      %p174 = scmp.eq.s32.totalorder %s29, 1
      %p175 = por %p173, %p174
      %p176 = scmp.ne.s32.totalorder %s167, %s168
      %p177 = scmp.eq.s32.totalorder %s29, 0
      %p178 = por %p176, %p177
      %p179 = scmp.ne.s32.totalorder %s167, %s168
      %p180 = scmp.eq.s32.totalorder %s30, 1
      %p181 = por %p179, %p180
      %p183 = scmp.ne.s32.totalorder %s168, %s182
      %p184 = scmp.eq.s32.totalorder %s30, 0
      %p185 = por %p183, %p184
      %s187 = sadd.s32 %s186, 1
      %p190 = scmp.eq.s32.totalorder %s24, 1
      %p191 = scmp.ne.s32.totalorder %s186, %s188
      %p192 = scmp.eq.s32.totalorder %s24, 0
      %p193 = por %p191, %p192
      %p194 = scmp.ne.s32.totalorder %s186, %s188
      %p195 = scmp.eq.s32.totalorder %s29, 1
      %p196 = por %p194, %p195
      %p197 = scmp.ne.s32.totalorder %s188, %s189
      %p198 = scmp.eq.s32.totalorder %s29, 0
      %p199 = por %p197, %p198
      %p200 = scmp.ne.s32.totalorder %s188, %s189
      %p201 = scmp.eq.s32.totalorder %s30, 1
      %p202 = por %p200, %p201
      %p204 = scmp.ne.s32.totalorder %s189, %s203
      %p205 = scmp.eq.s32.totalorder %s30, 0
      %p206 = por %p204, %p205
      %s208 = sadd.s32 %s207, 1
      %p211 = scmp.eq.s32.totalorder %s24, 1
      %p212 = scmp.ne.s32.totalorder %s207, %s209
      %p213 = scmp.eq.s32.totalorder %s24, 0
      %p214 = por %p212, %p213
      %p215 = scmp.ne.s32.totalorder %s207, %s209
      %p216 = scmp.eq.s32.totalorder %s29, 1
      %p217 = por %p215, %p216
      %p218 = scmp.ne.s32.totalorder %s209, %s210
      %p219 = scmp.eq.s32.totalorder %s29, 0
      %p220 = por %p218, %p219
      %p221 = scmp.ne.s32.totalorder %s209, %s210
      %p222 = scmp.eq.s32.totalorder %s30, 1
      %p223 = por %p221, %p222
      %p225 = scmp.ne.s32.totalorder %s210, %s224
      %p226 = scmp.eq.s32.totalorder %s30, 0
      %p227 = por %p225, %p226
      %s228 = ssub.s32 %s31, %s43
      %s229 = ssub.s32 %s32, %s39
      %s230 = sor.u32 %s228, %s229
      %p231 = scmp.eq.s32.totalorder %s230, 0
      %s233 = sadd.s32 %s232, 1
      %s234 = scalar_select %p231, %s232, %s233
      %p237 = pneg %p231
      %p238 = scmp.eq.s32.totalorder %s24, 1
      %p239 = por %p237, %p238
      %p240 = scmp.ne.s32.totalorder %s232, %s235
      %p241 = scmp.eq.s32.totalorder %s24, 0
      %p242 = por %p240, %p241
      %p243 = scmp.ne.s32.totalorder %s232, %s235
      %p244 = scmp.eq.s32.totalorder %s29, 1
      %p245 = por %p243, %p244
      %p246 = scmp.ne.s32.totalorder %s235, %s236
      %p247 = scmp.eq.s32.totalorder %s29, 0
      %p248 = por %p246, %p247
      %p249 = scmp.ne.s32.totalorder %s235, %s236
      %p250 = scmp.eq.s32.totalorder %s30, 1
      %p251 = por %p249, %p250
      %p253 = scmp.ne.s32.totalorder %s236, %s252
      %p254 = scmp.eq.s32.totalorder %s30, 0
      %p255 = por %p253, %p254
      %p256 = scmp.le.s32.totalorder 1, %s24
      %p257 = scmp.lt.s32.totalorder %s24, 3
      %p258 = pnand %p256, %p257
      %p259 = pneg %p258
      // Predicated region
      $region9: #{tpu_custom_call.1} parent=5 // pred_check
        _
      $region10: #{tpu_custom_call.1} parent=5 // pred_check_branch
        %261 = sbr.rel (%p258) target = $region12
      $region11: #{tpu_custom_call.1} parent=5 // pred_region
        %s262 = ssub.s32 %s24, 1
        // Predicated region
        $region13: #{tpu_custom_call.1} parent=11 // pred_check
          %p263 = pneg %p115
        $region14: #{tpu_custom_call.1} parent=11 // pred_check_branch
          %265 = sbr.rel (%p263) target = $region16
        $region15: #{tpu_custom_call.1} parent=11 // pred_region
          %s267 = ssub.s32 7168, 7168
          %268 = vsyncadd [#allocation6], %s267
          %s269 = sshll.u32 [#allocation7], 4
          %s270 = int_to_ptr.vmem [resolvable:$true] %s269
          %275 = dma.hbm_to_vmem [thread:$0]  %s2, 7168, %s270, [#allocation6], 64, 64, 4
        $region16: #{tpu_custom_call.1} parent=11 // pred_fallthru
          _
        // Predicated region
        $region17: #{tpu_custom_call.1} parent=11 // pred_check
          %p276 = pneg %p136
        $region18: #{tpu_custom_call.1} parent=11 // pred_check_branch
          %278 = sbr.rel (%p276) target = $region20
        $region19: #{tpu_custom_call.1} parent=11 // pred_region
          _
        $region20: #{tpu_custom_call.1} parent=11 // pred_fallthru
          _
        // Predicated region
        $region21: #{tpu_custom_call.1} parent=11 // pred_check
          %p279 = pneg %p157
        $region22: #{tpu_custom_call.1} parent=11 // pred_check_branch
          %281 = sbr.rel (%p279) target = $region24
        $region23: #{tpu_custom_call.1} parent=11 // pred_region
          %s283 = ssub.s32 1024, 1024
          %284 = vsyncadd [#allocation9], %s283
          %s285 = sshll.u32 [#allocation8], 4
          %s286 = int_to_ptr.vmem [resolvable:$true] %s285
          %291 = dma.hbm_to_vmem [thread:$0]  %s4, 1024, %s286, [#allocation9], 64, 64, 4
        $region24: #{tpu_custom_call.1} parent=11 // pred_fallthru
          _
        // Predicated region
        $region25: #{tpu_custom_call.1} parent=11 // pred_check
          %p292 = pneg %p178
        $region26: #{tpu_custom_call.1} parent=11 // pred_check_branch
          %294 = sbr.rel (%p292) target = $region28
        $region27: #{tpu_custom_call.1} parent=11 // pred_region
          _
        $region28: #{tpu_custom_call.1} parent=11 // pred_fallthru
          _
        // Predicated region
        $region29: #{tpu_custom_call.1} parent=11 // pred_check
          %p295 = pneg %p199
        $region30: #{tpu_custom_call.1} parent=11 // pred_check_branch
          %297 = sbr.rel (%p295) target = $region32
        $region31: #{tpu_custom_call.1} parent=11 // pred_region
          %s299 = ssub.s32 1024, 1024
          %300 = vsyncadd [#allocation9], %s299
          %s301 = sshll.u32 [#allocation10], 4
          %s302 = int_to_ptr.vmem [resolvable:$true] %s301
          %307 = dma.hbm_to_vmem [thread:$0]  %s6, 1024, %s302, [#allocation9], 64, 64, 4
        $region32: #{tpu_custom_call.1} parent=11 // pred_fallthru
          _
        // Predicated region
        $region33: #{tpu_custom_call.1} parent=11 // pred_check
          %p308 = pneg %p220
        $region34: #{tpu_custom_call.1} parent=11 // pred_check_branch
          %310 = sbr.rel (%p308) target = $region36
        $region35: #{tpu_custom_call.1} parent=11 // pred_region
          _
        $region36: #{tpu_custom_call.1} parent=11 // pred_fallthru
          _
      $region12: #{tpu_custom_call.1} parent=5 // pred_fallthru
        _
      %p311 = scmp.lt.s32.totalorder %s24, 2
      // Predicated region
      $region37: #{tpu_custom_call.1} parent=5 // pred_check
        %p312 = pneg %p311
      $region38: #{tpu_custom_call.1} parent=5 // pred_check_branch
        %314 = sbr.rel (%p312) target = $region40
      $region39: #{tpu_custom_call.1} parent=5 // pred_region
        // Predicated region
        $region41: #{tpu_custom_call.1} parent=39 // pred_check
          %p315 = pneg %p58
        $region42: #{tpu_custom_call.1} parent=39 // pred_check_branch
          %317 = sbr.rel (%p315) target = $region44
        $region43: #{tpu_custom_call.1} parent=39 // pred_region
          %s318 = sand.u32 %s48, 1
          %s319 = scalar_lea.sflag [#allocation3], %s318
          %s320 = sand.u32 %s48, 1
          %s321 = smul.addr %s320, 8
          %s322 = scalar_lea.vmem [#allocation2], %s321
          %s323 = smul.u32 2, %s32
          %s325 = ssub.s32 128, 128
          %326 = vsyncadd %s319, %s325
          %s327 = smul.addr %s31, 4
          %s328 = sadd.s32 %s323, %s327
          %s329 = smul.addr %s328, 64
          %s330 = scalar_lea.hbm %s0, %s329
          %s331 = sshll.u32 %s322, 4
          %s332 = int_to_ptr.vmem [resolvable:$true] %s331
          %337 = dma.hbm_to_vmem [thread:$0]  %s330, 128, %s332, %s319, 64, 64, 4
        $region44: #{tpu_custom_call.1} parent=39 // pred_fallthru
          _
        // Predicated region
        $region45: #{tpu_custom_call.1} parent=39 // pred_check
          %p338 = pneg %p88
        $region46: #{tpu_custom_call.1} parent=39 // pred_check_branch
          %340 = sbr.rel (%p338) target = $region48
        $region47: #{tpu_custom_call.1} parent=39 // pred_region
          %s341 = sand.u32 %s24, 1
          %s342 = scalar_lea.sflag [#allocation6], %s341
          %s343 = sand.u32 %s78, 1
          %s344 = smul.addr %s343, 8
          %s345 = scalar_lea.vmem [#allocation5], %s344
          %s346 = sadd.s32 %s32, 1
          %s347 = smul.u32 2, %s346
          %s349 = ssub.s32 128, 128
          %350 = vsyncadd %s342, %s349
          %s351 = smul.addr %s31, 4
          %s352 = sadd.s32 %s347, %s351
          %s353 = smul.addr %s352, 64
          %s354 = scalar_lea.hbm %s1, %s353
          %s355 = sshll.u32 %s345, 4
          %s356 = int_to_ptr.vmem [resolvable:$true] %s355
          %361 = dma.hbm_to_vmem [thread:$0]  %s354, 128, %s356, %s342, 64, 64, 4
        $region48: #{tpu_custom_call.1} parent=39 // pred_fallthru
          _
      $region40: #{tpu_custom_call.1} parent=5 // pred_fallthru
        _
      %p362 = scmp.le.s32.totalorder 1, %s24
      %p363 = scmp.lt.s32.totalorder %s24, 3
      %p364 = pnand %p362, %p363
      %p365 = pneg %p364
      // Predicated region
      $region49: #{tpu_custom_call.1} parent=5 // pred_check
        _
      $region50: #{tpu_custom_call.1} parent=5 // pred_check_branch
        %367 = sbr.rel (%p364) target = $region52
      $region51: #{tpu_custom_call.1} parent=5 // pred_region
        %s368 = ssub.s32 %s24, 1
        %s369 = sand.u32 %s51, 1
        %s370 = scalar_lea.sflag [#allocation3], %s369
        %s371 = sand.u32 %s51, 1
        %s372 = smul.addr %s371, 8
        %s373 = scalar_lea.vmem [#allocation2], %s372
        // Predicated region
        $region53: #{tpu_custom_call.1} parent=51 // pred_check
          %p374 = pneg %p64
        $region54: #{tpu_custom_call.1} parent=51 // pred_check_branch
          %376 = sbr.rel (%p374) target = $region56
        $region55: #{tpu_custom_call.1} parent=51 // pred_region
          %377 = dma.done %s370, 128
        $region56: #{tpu_custom_call.1} parent=51 // pred_fallthru
          _
        %s378 = sand.u32 %s29, 1
        %s379 = scalar_lea.sflag [#allocation6], %s378
        %s380 = sand.u32 %s81, 1
        %s381 = smul.addr %s380, 8
        %s382 = scalar_lea.vmem [#allocation5], %s381
        // Predicated region
        $region57: #{tpu_custom_call.1} parent=51 // pred_check
          %p383 = pneg %p94
        $region58: #{tpu_custom_call.1} parent=51 // pred_check_branch
          %385 = sbr.rel (%p383) target = $region60
        $region59: #{tpu_custom_call.1} parent=51 // pred_region
          %386 = dma.done %s379, 128
        $region60: #{tpu_custom_call.1} parent=51 // pred_fallthru
          _
        // Predicated region
        $region61: #{tpu_custom_call.1} parent=51 // pred_check
          %p387 = pneg %p115
        $region62: #{tpu_custom_call.1} parent=51 // pred_check_branch
          %389 = sbr.rel (%p387) target = $region64
        $region63: #{tpu_custom_call.1} parent=51 // pred_region
          %390 = dma.done [#allocation6], 7168
        $region64: #{tpu_custom_call.1} parent=51 // pred_fallthru
          _
        // Predicated region
        $region65: #{tpu_custom_call.1} parent=51 // pred_check
          %p391 = pneg %p157
        $region66: #{tpu_custom_call.1} parent=51 // pred_check_branch
          %393 = sbr.rel (%p391) target = $region68
        $region67: #{tpu_custom_call.1} parent=51 // pred_region
          %394 = dma.done [#allocation9], 1024
        $region68: #{tpu_custom_call.1} parent=51 // pred_fallthru
          _
        // Predicated region
        $region69: #{tpu_custom_call.1} parent=51 // pred_check
          %p395 = pneg %p199
        $region70: #{tpu_custom_call.1} parent=51 // pred_check_branch
          %397 = sbr.rel (%p395) target = $region72
        $region71: #{tpu_custom_call.1} parent=51 // pred_region
          %398 = dma.done [#allocation9], 1024
        $region72: #{tpu_custom_call.1} parent=51 // pred_fallthru
          _
        %s399 = sand.u32 %s51, 1
        %s400 = scalar_lea.sflag [#allocation3], %s399
        %s401 = sand.u32 %s51, 1
        %s402 = smul.addr %s401, 8
        %s403 = scalar_lea.vmem [#allocation2], %s402
        %p404 = pneg %p64
        %p405 = pneg %p61
        %s406 = sand.u32 %s29, 1
        %s407 = scalar_lea.sflag [#allocation6], %s406
        %s408 = sand.u32 %s81, 1
        %s409 = smul.addr %s408, 8
        %s410 = scalar_lea.vmem [#allocation5], %s409
        %p411 = pneg %p94
        %p412 = pneg %p91
        %p413 = pneg %p115
        %p414 = pneg %p112
        %p415 = pneg %p136
        %p416 = pneg %p133
        %p417 = pneg %p157
        %p418 = pneg %p154
        %p419 = pneg %p178
        %p420 = pneg %p175
        %p421 = pneg %p199
        %p422 = pneg %p196
        %p423 = pneg %p220
        %p424 = pneg %p217
        %p425 = pneg %p248
        %p426 = pneg %p245
        %s427 = sand.u32 %s235, 1
        %s428 = scalar_lea.sflag [#allocation4], %s427
        %s429 = sand.u32 %s235, 1
        %s430 = smul.addr %s429, 16
        %s431 = scalar_lea.vmem [#allocation11], %s430
        %s432 = smul.u32 2, %s34
        %s433 = sadd.s32 %s34, 1
        %s434 = smul.u32 2, %s433
        %s435 = smul.u32 2, %s34
        %v437 = vld [vmem:[%s373] sm:$0xf]
        %v438 = vld [vmem:[%s373 + $0x4] sm:$0xf]
        %v439 = vld [vmem:[%s382] sm:$0xf]
        %v440 = vld [vmem:[%s382 + $0x4] sm:$0xf]
        %v443 = vunpack.c.l.b16 %v437
        %v444 = vunpack.c.l.b16 %v438
        %v445 = vpack.c.b16 %v444, %v443
        %v449 = vunpack.c.l.b16 %v439
        %v450 = vunpack.c.l.b16 %v440
        %v451 = vpack.c.b16 %v450, %v449
        %v453 = vunpack.c.l.bf16 %v445
        %v454 = vunpack.c.h.bf16 %v445
        %v455 = vunpack.c.l.bf16 %v451
        %v456 = vld [vmem:[#allocation7] sm:$0xf]
        %v457 = vld [vmem:[#allocation7 + $0x4] sm:$0xf]
        %v458 = vld [vmem:[#allocation7 + $0x8] sm:$0xf]
        %v459 = vld [vmem:[#allocation7 + $0xc] sm:$0xf]
        %v460 = vld [vmem:[#allocation7 + $0x10] sm:$0xf]
        %v461 = vld [vmem:[#allocation7 + $0x14] sm:$0xf]
        %v462 = vld [vmem:[#allocation7 + $0x18] sm:$0xf]
        %v463 = vld [vmem:[#allocation7 + $0x1c] sm:$0xf]
        %v464 = vld [vmem:[#allocation7 + $0x20] sm:$0xf]
        %v465 = vld [vmem:[#allocation7 + $0x24] sm:$0xf]
        %v466 = vld [vmem:[#allocation7 + $0x28] sm:$0xf]
        %v467 = vld [vmem:[#allocation7 + $0x2c] sm:$0xf]
        %v468 = vld [vmem:[#allocation7 + $0x30] sm:$0xf]
        %v469 = vld [vmem:[#allocation7 + $0x34] sm:$0xf]
        %v470 = vld [vmem:[#allocation7 + $0x38] sm:$0xf]
        %v471 = vld [vmem:[#allocation7 + $0x3c] sm:$0xf]
        %s472 = scalar_lea.vmem [#allocation7], 64
        %v473 = vld [vmem:[%s472] sm:$0xf]
        %v474 = vld [vmem:[%s472 + $0x4] sm:$0xf]
        %v475 = vld [vmem:[%s472 + $0x8] sm:$0xf]
        %v476 = vld [vmem:[%s472 + $0xc] sm:$0xf]
        %v477 = vld [vmem:[%s472 + $0x10] sm:$0xf]
        %v478 = vld [vmem:[%s472 + $0x14] sm:$0xf]
        %v479 = vld [vmem:[%s472 + $0x18] sm:$0xf]
        %v480 = vld [vmem:[%s472 + $0x1c] sm:$0xf]
        %v481 = vld [vmem:[%s472 + $0x20] sm:$0xf]
        %v482 = vld [vmem:[%s472 + $0x24] sm:$0xf]
        %v483 = vld [vmem:[%s472 + $0x28] sm:$0xf]
        %v484 = vld [vmem:[%s472 + $0x2c] sm:$0xf]
        %v485 = vld [vmem:[%s472 + $0x30] sm:$0xf]
        %v486 = vld [vmem:[%s472 + $0x34] sm:$0xf]
        %v487 = vld [vmem:[%s472 + $0x38] sm:$0xf]
        %v488 = vld [vmem:[%s472 + $0x3c] sm:$0xf]
        %vm489 = vsmask.f32 7424
        %v491 = vshrl.u32 %v445, 16
        %v493 = vshll.u32 %v445, 16
        %v495 = vrot.slane %v493, 1
        %v496 = vor.u32 %v491, %v495
        %v498 = vshll.u32 %v451, 16
        %v500 = vrot.slane %v498, 1
        %v501 = vsel %vm489, %v496, %v500
        %v519 = vunpack.c.l.b16 %v473
        %v520 = vunpack.c.l.b16 %v474
        %v521 = vunpack.c.l.b16 %v475
        %v522 = vunpack.c.l.b16 %v476
        %v523 = vunpack.c.l.b16 %v477
        %v524 = vunpack.c.l.b16 %v478
        %v525 = vunpack.c.l.b16 %v479
        %v526 = vunpack.c.l.b16 %v480
        %v527 = vunpack.c.l.b16 %v481
        %v528 = vunpack.c.l.b16 %v482
        %v529 = vunpack.c.l.b16 %v483
        %v530 = vunpack.c.l.b16 %v484
        %v531 = vunpack.c.l.b16 %v485
        %v532 = vunpack.c.l.b16 %v486
        %v533 = vunpack.c.l.b16 %v487
        %v534 = vunpack.c.l.b16 %v488
        %v535 = vpack.c.b16 %v520, %v519
        %v536 = vpack.c.b16 %v522, %v521
        %v537 = vpack.c.b16 %v524, %v523
        %v538 = vpack.c.b16 %v526, %v525
        %v539 = vpack.c.b16 %v528, %v527
        %v540 = vpack.c.b16 %v530, %v529
        %v541 = vpack.c.b16 %v532, %v531
        %v542 = vpack.c.b16 %v534, %v533
        %551 = vmatprep.subr.bf16.mxu0 0
        %552 = vmatpush1.bf16.msra.mxu0 %v535
        %553 = vmatprep.subr.bf16.mxu0 0
        %554 = vmatpush1.bf16.msra.mxu0 %v536
        %555 = vmatprep.subr.bf16.mxu0 0
        %556 = vmatpush1.bf16.msra.mxu0 %v537
        %557 = vmatprep.subr.bf16.mxu0 0
        %558 = vmatpush1.bf16.msra.mxu0 %v538
        %559 = vmatprep.subr.bf16.mxu0 0
        %560 = vmatpush1.bf16.msra.mxu0 %v539
        %561 = vmatprep.subr.bf16.mxu0 0
        %562 = vmatpush1.bf16.msra.mxu0 %v540
        %563 = vmatprep.subr.bf16.mxu0 0
        %564 = vmatpush1.bf16.msra.mxu0 %v541
        %565 = vmatprep.subr.bf16.mxu0 0
        %566 = vmatpush1.bf16.msra.mxu0 %v542
        %567 = vmatprep.subr.bf16.mxu0 0
        %568 = vmatpush1.bf16.msra.mxu0 0
        %569 = vmatprep.subr.bf16.mxu0 0
        %570 = vmatpush1.bf16.msra.mxu0 0
        %571 = vmatprep.subr.bf16.mxu0 0
        %572 = vmatpush1.bf16.msra.mxu0 0
        %573 = vmatprep.subr.bf16.mxu0 0
        %574 = vmatpush1.bf16.msra.mxu0 0
        %575 = vmatprep.subr.bf16.mxu0 0
        %576 = vmatpush1.bf16.msra.mxu0 0
        %577 = vmatprep.subr.bf16.mxu0 0
        %578 = vmatpush1.bf16.msra.mxu0 0
        %579 = vmatprep.subr.bf16.mxu0 0
        %580 = vmatpush1.bf16.msra.mxu0 0
        %581 = vmatprep.subr.bf16.mxu0 0
        %582 = vmatpush1.bf16.msra.mxu0 0
        %583 = vmatprep.mubr.bf16.mxu0 0
        %584 = vmatmul.mubr.bf16.gmra.mrb[0].mxu0 %v501
        %v585 = vpop.f32.mrb[0].mxu0
        %v586 = vadd.f32 0.0, %v585
        %v587 = vpop.f32.mrb[0].mxu0
        %v588 = vpop.f32.mrb[0].mxu0
        %v589 = vadd.f32 0.0, %v588
        %v590 = vpop.f32.mrb[0].mxu0
        %591 = vdwg.mxu0
        %v608 = vunpack.c.l.b16 %v456
        %v609 = vunpack.c.l.b16 %v457
        %v610 = vunpack.c.l.b16 %v458
        %v611 = vunpack.c.l.b16 %v459
        %v612 = vunpack.c.l.b16 %v460
        %v613 = vunpack.c.l.b16 %v461
        %v614 = vunpack.c.l.b16 %v462
        %v615 = vunpack.c.l.b16 %v463
        %v616 = vunpack.c.l.b16 %v464
        %v617 = vunpack.c.l.b16 %v465
        %v618 = vunpack.c.l.b16 %v466
        %v619 = vunpack.c.l.b16 %v467
        %v620 = vunpack.c.l.b16 %v468
        %v621 = vunpack.c.l.b16 %v469
        %v622 = vunpack.c.l.b16 %v470
        %v623 = vunpack.c.l.b16 %v471
        %v624 = vpack.c.b16 %v609, %v608
        %v625 = vpack.c.b16 %v611, %v610
        %v626 = vpack.c.b16 %v613, %v612
        %v627 = vpack.c.b16 %v615, %v614
        %v628 = vpack.c.b16 %v617, %v616
        %v629 = vpack.c.b16 %v619, %v618
        %v630 = vpack.c.b16 %v621, %v620
        %v631 = vpack.c.b16 %v623, %v622
        %640 = vmatprep.subr.bf16.mxu0 0
        %641 = vmatpush1.bf16.msra.mxu0 %v624
        %642 = vmatprep.subr.bf16.mxu0 0
        %643 = vmatpush1.bf16.msra.mxu0 %v625
        %644 = vmatprep.subr.bf16.mxu0 0
        %645 = vmatpush1.bf16.msra.mxu0 %v626
        %646 = vmatprep.subr.bf16.mxu0 0
        %647 = vmatpush1.bf16.msra.mxu0 %v627
        %648 = vmatprep.subr.bf16.mxu0 0
        %649 = vmatpush1.bf16.msra.mxu0 %v628
        %650 = vmatprep.subr.bf16.mxu0 0
        %651 = vmatpush1.bf16.msra.mxu0 %v629
        %652 = vmatprep.subr.bf16.mxu0 0
        %653 = vmatpush1.bf16.msra.mxu0 %v630
        %654 = vmatprep.subr.bf16.mxu0 0
        %655 = vmatpush1.bf16.msra.mxu0 %v631
        %656 = vmatprep.subr.bf16.mxu0 0
        %657 = vmatpush1.bf16.msra.mxu0 0
        %658 = vmatprep.subr.bf16.mxu0 0
        %659 = vmatpush1.bf16.msra.mxu0 0
        %660 = vmatprep.subr.bf16.mxu0 0
        %661 = vmatpush1.bf16.msra.mxu0 0
        %662 = vmatprep.subr.bf16.mxu0 0
        %663 = vmatpush1.bf16.msra.mxu0 0
        %664 = vmatprep.subr.bf16.mxu0 0
        %665 = vmatpush1.bf16.msra.mxu0 0
        %666 = vmatprep.subr.bf16.mxu0 0
        %667 = vmatpush1.bf16.msra.mxu0 0
        %668 = vmatprep.subr.bf16.mxu0 0
        %669 = vmatpush1.bf16.msra.mxu0 0
        %670 = vmatprep.subr.bf16.mxu0 0
        %671 = vmatpush1.bf16.msra.mxu0 0
        %672 = vmatprep.mubr.bf16.mxu0 0
        %673 = vmatmul.mubr.bf16.gmra.mrb[0].mxu0 %v445
        %v674 = vpop.f32.mrb[0].mxu0
        %v675 = vadd.f32 %v586, %v674
        %v676 = vpop.f32.mrb[0].mxu0
        %v677 = vpop.f32.mrb[0].mxu0
        %v678 = vadd.f32 %v589, %v677
        %v679 = vpop.f32.mrb[0].mxu0
        %680 = vdwg.mxu0
        %s681 = scalar_lea.vmem [#allocation7], 128
        %v682 = vld [vmem:[%s681] sm:$0xf]
        %v683 = vld [vmem:[%s681 + $0x4] sm:$0xf]
        %v684 = vld [vmem:[%s681 + $0x8] sm:$0xf]
        %v685 = vld [vmem:[%s681 + $0xc] sm:$0xf]
        %v686 = vld [vmem:[%s681 + $0x10] sm:$0xf]
        %v687 = vld [vmem:[%s681 + $0x14] sm:$0xf]
        %v688 = vld [vmem:[%s681 + $0x18] sm:$0xf]
        %v689 = vld [vmem:[%s681 + $0x1c] sm:$0xf]
        %v690 = vld [vmem:[%s681 + $0x20] sm:$0xf]
        %v691 = vld [vmem:[%s681 + $0x24] sm:$0xf]
        %v692 = vld [vmem:[%s681 + $0x28] sm:$0xf]
        %v693 = vld [vmem:[%s681 + $0x2c] sm:$0xf]
        %v694 = vld [vmem:[%s681 + $0x30] sm:$0xf]
        %v695 = vld [vmem:[%s681 + $0x34] sm:$0xf]
        %v696 = vld [vmem:[%s681 + $0x38] sm:$0xf]
        %v697 = vld [vmem:[%s681 + $0x3c] sm:$0xf]
        %vm698 = vcmask 1046528
        %v699 = vrot.slane %v445, 1
        %v700 = vrot.slane %v451, 1
        %v701 = vsel %vm698, %v699, %v700
        %v719 = vunpack.c.l.b16 %v682
        %v720 = vunpack.c.l.b16 %v683
        %v721 = vunpack.c.l.b16 %v684
        %v722 = vunpack.c.l.b16 %v685
        %v723 = vunpack.c.l.b16 %v686
        %v724 = vunpack.c.l.b16 %v687
        %v725 = vunpack.c.l.b16 %v688
        %v726 = vunpack.c.l.b16 %v689
        %v727 = vunpack.c.l.b16 %v690
        %v728 = vunpack.c.l.b16 %v691
        %v729 = vunpack.c.l.b16 %v692
        %v730 = vunpack.c.l.b16 %v693
        %v731 = vunpack.c.l.b16 %v694
        %v732 = vunpack.c.l.b16 %v695
        %v733 = vunpack.c.l.b16 %v696
        %v734 = vunpack.c.l.b16 %v697
        %v735 = vpack.c.b16 %v720, %v719
        %v736 = vpack.c.b16 %v722, %v721
        %v737 = vpack.c.b16 %v724, %v723
        %v738 = vpack.c.b16 %v726, %v725
        %v739 = vpack.c.b16 %v728, %v727
        %v740 = vpack.c.b16 %v730, %v729
        %v741 = vpack.c.b16 %v732, %v731
        %v742 = vpack.c.b16 %v734, %v733
        %751 = vmatprep.subr.bf16.mxu0 0
        %752 = vmatpush1.bf16.msra.mxu0 %v735
        %753 = vmatprep.subr.bf16.mxu0 0
        %754 = vmatpush1.bf16.msra.mxu0 %v736
        %755 = vmatprep.subr.bf16.mxu0 0
        %756 = vmatpush1.bf16.msra.mxu0 %v737
        %757 = vmatprep.subr.bf16.mxu0 0
        %758 = vmatpush1.bf16.msra.mxu0 %v738
        %759 = vmatprep.subr.bf16.mxu0 0
        %760 = vmatpush1.bf16.msra.mxu0 %v739
        %761 = vmatprep.subr.bf16.mxu0 0
        %762 = vmatpush1.bf16.msra.mxu0 %v740
        %763 = vmatprep.subr.bf16.mxu0 0
        %764 = vmatpush1.bf16.msra.mxu0 %v741
        %765 = vmatprep.subr.bf16.mxu0 0
        %766 = vmatpush1.bf16.msra.mxu0 %v742
        %767 = vmatprep.subr.bf16.mxu0 0
        %768 = vmatpush1.bf16.msra.mxu0 0
        %769 = vmatprep.subr.bf16.mxu0 0
        %770 = vmatpush1.bf16.msra.mxu0 0
        %771 = vmatprep.subr.bf16.mxu0 0
        %772 = vmatpush1.bf16.msra.mxu0 0
        %773 = vmatprep.subr.bf16.mxu0 0
        %774 = vmatpush1.bf16.msra.mxu0 0
        %775 = vmatprep.subr.bf16.mxu0 0
        %776 = vmatpush1.bf16.msra.mxu0 0
        %777 = vmatprep.subr.bf16.mxu0 0
        %778 = vmatpush1.bf16.msra.mxu0 0
        %779 = vmatprep.subr.bf16.mxu0 0
        %780 = vmatpush1.bf16.msra.mxu0 0
        %781 = vmatprep.subr.bf16.mxu0 0
        %782 = vmatpush1.bf16.msra.mxu0 0
        %783 = vmatprep.mubr.bf16.mxu0 0
        %784 = vmatmul.mubr.bf16.gmra.mrb[0].mxu0 %v701
        %v785 = vpop.f32.mrb[0].mxu0
        %v786 = vadd.f32 0.0, %v785
        %v787 = vpop.f32.mrb[0].mxu0
        %v788 = vpop.f32.mrb[0].mxu0
        %v789 = vadd.f32 0.0, %v788
        %v790 = vpop.f32.mrb[0].mxu0
        %791 = vdwg.mxu0
        %v792 = vadd.f32 %v675, %v786
        %v793 = vadd.f32 %v678, %v789
        %s794 = scalar_lea.vmem [#allocation7], 192
        %v795 = vld [vmem:[%s794] sm:$0xf]
        %v796 = vld [vmem:[%s794 + $0x4] sm:$0xf]
        %v797 = vld [vmem:[%s794 + $0x8] sm:$0xf]
        %v798 = vld [vmem:[%s794 + $0xc] sm:$0xf]
        %v799 = vld [vmem:[%s794 + $0x10] sm:$0xf]
        %v800 = vld [vmem:[%s794 + $0x14] sm:$0xf]
        %v801 = vld [vmem:[%s794 + $0x18] sm:$0xf]
        %v802 = vld [vmem:[%s794 + $0x1c] sm:$0xf]
        %v803 = vld [vmem:[%s794 + $0x20] sm:$0xf]
        %v804 = vld [vmem:[%s794 + $0x24] sm:$0xf]
        %v805 = vld [vmem:[%s794 + $0x28] sm:$0xf]
        %v806 = vld [vmem:[%s794 + $0x2c] sm:$0xf]
        %v807 = vld [vmem:[%s794 + $0x30] sm:$0xf]
        %v808 = vld [vmem:[%s794 + $0x34] sm:$0xf]
        %v809 = vld [vmem:[%s794 + $0x38] sm:$0xf]
        %v810 = vld [vmem:[%s794 + $0x3c] sm:$0xf]
        %vm811 = vsmask.f32 6400
        %v812 = vrot.slane %v491, 1
        %v813 = vrot.slane %v493, 2
        %v814 = vor.u32 %v812, %v813
        %v815 = vshrl.u32 %v451, 16
        %v817 = vrot.slane %v815, 1
        %v818 = vrot.slane %v498, 2
        %v819 = vor.u32 %v817, %v818
        %v820 = vsel %vm811, %v814, %v819
        %v838 = vunpack.c.l.b16 %v795
        %v839 = vunpack.c.l.b16 %v796
        %v840 = vunpack.c.l.b16 %v797
        %v841 = vunpack.c.l.b16 %v798
        %v842 = vunpack.c.l.b16 %v799
        %v843 = vunpack.c.l.b16 %v800
        %v844 = vunpack.c.l.b16 %v801
        %v845 = vunpack.c.l.b16 %v802
        %v846 = vunpack.c.l.b16 %v803
        %v847 = vunpack.c.l.b16 %v804
        %v848 = vunpack.c.l.b16 %v805
        %v849 = vunpack.c.l.b16 %v806
        %v850 = vunpack.c.l.b16 %v807
        %v851 = vunpack.c.l.b16 %v808
        %v852 = vunpack.c.l.b16 %v809
        %v853 = vunpack.c.l.b16 %v810
        %v854 = vpack.c.b16 %v839, %v838
        %v855 = vpack.c.b16 %v841, %v840
        %v856 = vpack.c.b16 %v843, %v842
        %v857 = vpack.c.b16 %v845, %v844
        %v858 = vpack.c.b16 %v847, %v846
        %v859 = vpack.c.b16 %v849, %v848
        %v860 = vpack.c.b16 %v851, %v850
        %v861 = vpack.c.b16 %v853, %v852
        %870 = vmatprep.subr.bf16.mxu0 0
        %871 = vmatpush1.bf16.msra.mxu0 %v854
        %872 = vmatprep.subr.bf16.mxu0 0
        %873 = vmatpush1.bf16.msra.mxu0 %v855
        %874 = vmatprep.subr.bf16.mxu0 0
        %875 = vmatpush1.bf16.msra.mxu0 %v856
        %876 = vmatprep.subr.bf16.mxu0 0
        %877 = vmatpush1.bf16.msra.mxu0 %v857
        %878 = vmatprep.subr.bf16.mxu0 0
        %879 = vmatpush1.bf16.msra.mxu0 %v858
        %880 = vmatprep.subr.bf16.mxu0 0
        %881 = vmatpush1.bf16.msra.mxu0 %v859
        %882 = vmatprep.subr.bf16.mxu0 0
        %883 = vmatpush1.bf16.msra.mxu0 %v860
        %884 = vmatprep.subr.bf16.mxu0 0
        %885 = vmatpush1.bf16.msra.mxu0 %v861
        %886 = vmatprep.subr.bf16.mxu0 0
        %887 = vmatpush1.bf16.msra.mxu0 0
        %888 = vmatprep.subr.bf16.mxu0 0
        %889 = vmatpush1.bf16.msra.mxu0 0
        %890 = vmatprep.subr.bf16.mxu0 0
        %891 = vmatpush1.bf16.msra.mxu0 0
        %892 = vmatprep.subr.bf16.mxu0 0
        %893 = vmatpush1.bf16.msra.mxu0 0
        %894 = vmatprep.subr.bf16.mxu0 0
        %895 = vmatpush1.bf16.msra.mxu0 0
        %896 = vmatprep.subr.bf16.mxu0 0
        %897 = vmatpush1.bf16.msra.mxu0 0
        %898 = vmatprep.subr.bf16.mxu0 0
        %899 = vmatpush1.bf16.msra.mxu0 0
        %900 = vmatprep.subr.bf16.mxu0 0
        %901 = vmatpush1.bf16.msra.mxu0 0
        %902 = vmatprep.mubr.bf16.mxu0 0
        %903 = vmatmul.mubr.bf16.gmra.mrb[0].mxu0 %v820
        %v904 = vpop.f32.mrb[0].mxu0
        %v905 = vadd.f32 0.0, %v904
        %v906 = vpop.f32.mrb[0].mxu0
        %v907 = vpop.f32.mrb[0].mxu0
        %v908 = vadd.f32 0.0, %v907
        %v909 = vpop.f32.mrb[0].mxu0
        %910 = vdwg.mxu0
        %v911 = vadd.f32 %v792, %v905
        %v912 = vadd.f32 %v793, %v908
        %s913 = scalar_lea.vmem [#allocation7], 256
        %v914 = vld [vmem:[%s913] sm:$0xf]
        %v915 = vld [vmem:[%s913 + $0x4] sm:$0xf]
        %v916 = vld [vmem:[%s913 + $0x8] sm:$0xf]
        %v917 = vld [vmem:[%s913 + $0xc] sm:$0xf]
        %v918 = vld [vmem:[%s913 + $0x10] sm:$0xf]
        %v919 = vld [vmem:[%s913 + $0x14] sm:$0xf]
        %v920 = vld [vmem:[%s913 + $0x18] sm:$0xf]
        %v921 = vld [vmem:[%s913 + $0x1c] sm:$0xf]
        %v922 = vld [vmem:[%s913 + $0x20] sm:$0xf]
        %v923 = vld [vmem:[%s913 + $0x24] sm:$0xf]
        %v924 = vld [vmem:[%s913 + $0x28] sm:$0xf]
        %v925 = vld [vmem:[%s913 + $0x2c] sm:$0xf]
        %v926 = vld [vmem:[%s913 + $0x30] sm:$0xf]
        %v927 = vld [vmem:[%s913 + $0x34] sm:$0xf]
        %v928 = vld [vmem:[%s913 + $0x38] sm:$0xf]
        %v929 = vld [vmem:[%s913 + $0x3c] sm:$0xf]
        %vm930 = vcmask 1045504
        %v931 = vrot.slane %v445, 2
        %v932 = vrot.slane %v451, 2
        %v933 = vsel %vm930, %v931, %v932
        %v951 = vunpack.c.l.b16 %v914
        %v952 = vunpack.c.l.b16 %v915
        %v953 = vunpack.c.l.b16 %v916
        %v954 = vunpack.c.l.b16 %v917
        %v955 = vunpack.c.l.b16 %v918
        %v956 = vunpack.c.l.b16 %v919
        %v957 = vunpack.c.l.b16 %v920
        %v958 = vunpack.c.l.b16 %v921
        %v959 = vunpack.c.l.b16 %v922
        %v960 = vunpack.c.l.b16 %v923
        %v961 = vunpack.c.l.b16 %v924
        %v962 = vunpack.c.l.b16 %v925
        %v963 = vunpack.c.l.b16 %v926
        %v964 = vunpack.c.l.b16 %v927
        %v965 = vunpack.c.l.b16 %v928
        %v966 = vunpack.c.l.b16 %v929
        %v967 = vpack.c.b16 %v952, %v951
        %v968 = vpack.c.b16 %v954, %v953
        %v969 = vpack.c.b16 %v956, %v955
        %v970 = vpack.c.b16 %v958, %v957
        %v971 = vpack.c.b16 %v960, %v959
        %v972 = vpack.c.b16 %v962, %v961
        %v973 = vpack.c.b16 %v964, %v963
        %v974 = vpack.c.b16 %v966, %v965
        %983 = vmatprep.subr.bf16.mxu0 0
        %984 = vmatpush1.bf16.msra.mxu0 %v967
        %985 = vmatprep.subr.bf16.mxu0 0
        %986 = vmatpush1.bf16.msra.mxu0 %v968
        %987 = vmatprep.subr.bf16.mxu0 0
        %988 = vmatpush1.bf16.msra.mxu0 %v969
        %989 = vmatprep.subr.bf16.mxu0 0
        %990 = vmatpush1.bf16.msra.mxu0 %v970
        %991 = vmatprep.subr.bf16.mxu0 0
        %992 = vmatpush1.bf16.msra.mxu0 %v971
        %993 = vmatprep.subr.bf16.mxu0 0
        %994 = vmatpush1.bf16.msra.mxu0 %v972
        %995 = vmatprep.subr.bf16.mxu0 0
        %996 = vmatpush1.bf16.msra.mxu0 %v973
        %997 = vmatprep.subr.bf16.mxu0 0
        %998 = vmatpush1.bf16.msra.mxu0 %v974
        %999 = vmatprep.subr.bf16.mxu0 0
        %1000 = vmatpush1.bf16.msra.mxu0 0
        %1001 = vmatprep.subr.bf16.mxu0 0
        %1002 = vmatpush1.bf16.msra.mxu0 0
        %1003 = vmatprep.subr.bf16.mxu0 0
        %1004 = vmatpush1.bf16.msra.mxu0 0
        %1005 = vmatprep.subr.bf16.mxu0 0
        %1006 = vmatpush1.bf16.msra.mxu0 0
        %1007 = vmatprep.subr.bf16.mxu0 0
        %1008 = vmatpush1.bf16.msra.mxu0 0
        %1009 = vmatprep.subr.bf16.mxu0 0
        %1010 = vmatpush1.bf16.msra.mxu0 0
        %1011 = vmatprep.subr.bf16.mxu0 0
        %1012 = vmatpush1.bf16.msra.mxu0 0
        %1013 = vmatprep.subr.bf16.mxu0 0
        %1014 = vmatpush1.bf16.msra.mxu0 0
        %1015 = vmatprep.mubr.bf16.mxu0 0
        %1016 = vmatmul.mubr.bf16.gmra.mrb[0].mxu0 %v933
        %v1017 = vpop.f32.mrb[0].mxu0
        %v1018 = vadd.f32 0.0, %v1017
        %v1019 = vpop.f32.mrb[0].mxu0
        %v1020 = vpop.f32.mrb[0].mxu0
        %v1021 = vadd.f32 0.0, %v1020
        %v1022 = vpop.f32.mrb[0].mxu0
        %1023 = vdwg.mxu0
        %v1024 = vadd.f32 %v911, %v1018
        %v1025 = vadd.f32 %v912, %v1021
        %s1026 = scalar_lea.vmem [#allocation7], 320
        %v1027 = vld [vmem:[%s1026] sm:$0xf]
        %v1028 = vld [vmem:[%s1026 + $0x4] sm:$0xf]
        %v1029 = vld [vmem:[%s1026 + $0x8] sm:$0xf]
        %v1030 = vld [vmem:[%s1026 + $0xc] sm:$0xf]
        %v1031 = vld [vmem:[%s1026 + $0x10] sm:$0xf]
        %v1032 = vld [vmem:[%s1026 + $0x14] sm:$0xf]
        %v1033 = vld [vmem:[%s1026 + $0x18] sm:$0xf]
        %v1034 = vld [vmem:[%s1026 + $0x1c] sm:$0xf]
        %v1035 = vld [vmem:[%s1026 + $0x20] sm:$0xf]
        %v1036 = vld [vmem:[%s1026 + $0x24] sm:$0xf]
        %v1037 = vld [vmem:[%s1026 + $0x28] sm:$0xf]
        %v1038 = vld [vmem:[%s1026 + $0x2c] sm:$0xf]
        %v1039 = vld [vmem:[%s1026 + $0x30] sm:$0xf]
        %v1040 = vld [vmem:[%s1026 + $0x34] sm:$0xf]
        %v1041 = vld [vmem:[%s1026 + $0x38] sm:$0xf]
        %v1042 = vld [vmem:[%s1026 + $0x3c] sm:$0xf]
        %vm1043 = vsmask.f32 5376
        %v1044 = vrot.slane %v491, 2
        %v1045 = vrot.slane %v493, 3
        %v1046 = vor.u32 %v1044, %v1045
        %v1047 = vrot.slane %v815, 2
        %v1048 = vrot.slane %v498, 3
        %v1049 = vor.u32 %v1047, %v1048
        %v1050 = vsel %vm1043, %v1046, %v1049
        %v1068 = vunpack.c.l.b16 %v1027
        %v1069 = vunpack.c.l.b16 %v1028
        %v1070 = vunpack.c.l.b16 %v1029
        %v1071 = vunpack.c.l.b16 %v1030
        %v1072 = vunpack.c.l.b16 %v1031
        %v1073 = vunpack.c.l.b16 %v1032
        %v1074 = vunpack.c.l.b16 %v1033
        %v1075 = vunpack.c.l.b16 %v1034
        %v1076 = vunpack.c.l.b16 %v1035
        %v1077 = vunpack.c.l.b16 %v1036
        %v1078 = vunpack.c.l.b16 %v1037
        %v1079 = vunpack.c.l.b16 %v1038
        %v1080 = vunpack.c.l.b16 %v1039
        %v1081 = vunpack.c.l.b16 %v1040
        %v1082 = vunpack.c.l.b16 %v1041
        %v1083 = vunpack.c.l.b16 %v1042
        %v1084 = vpack.c.b16 %v1069, %v1068
        %v1085 = vpack.c.b16 %v1071, %v1070
        %v1086 = vpack.c.b16 %v1073, %v1072
        %v1087 = vpack.c.b16 %v1075, %v1074
        %v1088 = vpack.c.b16 %v1077, %v1076
        %v1089 = vpack.c.b16 %v1079, %v1078
        %v1090 = vpack.c.b16 %v1081, %v1080
        %v1091 = vpack.c.b16 %v1083, %v1082
        %1100 = vmatprep.subr.bf16.mxu0 0
        %1101 = vmatpush1.bf16.msra.mxu0 %v1084
        %1102 = vmatprep.subr.bf16.mxu0 0
        %1103 = vmatpush1.bf16.msra.mxu0 %v1085
        %1104 = vmatprep.subr.bf16.mxu0 0
        %1105 = vmatpush1.bf16.msra.mxu0 %v1086
        %1106 = vmatprep.subr.bf16.mxu0 0
        %1107 = vmatpush1.bf16.msra.mxu0 %v1087
        %1108 = vmatprep.subr.bf16.mxu0 0
        %1109 = vmatpush1.bf16.msra.mxu0 %v1088
        %1110 = vmatprep.subr.bf16.mxu0 0
        %1111 = vmatpush1.bf16.msra.mxu0 %v1089
        %1112 = vmatprep.subr.bf16.mxu0 0
        %1113 = vmatpush1.bf16.msra.mxu0 %v1090
        %1114 = vmatprep.subr.bf16.mxu0 0
        %1115 = vmatpush1.bf16.msra.mxu0 %v1091
        %1116 = vmatprep.subr.bf16.mxu0 0
        %1117 = vmatpush1.bf16.msra.mxu0 0
        %1118 = vmatprep.subr.bf16.mxu0 0
        %1119 = vmatpush1.bf16.msra.mxu0 0
        %1120 = vmatprep.subr.bf16.mxu0 0
        %1121 = vmatpush1.bf16.msra.mxu0 0
        %1122 = vmatprep.subr.bf16.mxu0 0
        %1123 = vmatpush1.bf16.msra.mxu0 0
        %1124 = vmatprep.subr.bf16.mxu0 0
        %1125 = vmatpush1.bf16.msra.mxu0 0
        %1126 = vmatprep.subr.bf16.mxu0 0
        %1127 = vmatpush1.bf16.msra.mxu0 0
        %1128 = vmatprep.subr.bf16.mxu0 0
        %1129 = vmatpush1.bf16.msra.mxu0 0
        %1130 = vmatprep.subr.bf16.mxu0 0
        %1131 = vmatpush1.bf16.msra.mxu0 0
        %1132 = vmatprep.mubr.bf16.mxu0 0
        %1133 = vmatmul.mubr.bf16.gmra.mrb[0].mxu0 %v1050
        %v1134 = vpop.f32.mrb[0].mxu0
        %v1135 = vadd.f32 0.0, %v1134
        %v1136 = vpop.f32.mrb[0].mxu0
        %v1137 = vpop.f32.mrb[0].mxu0
        %v1138 = vadd.f32 0.0, %v1137
        %v1139 = vpop.f32.mrb[0].mxu0
        %1140 = vdwg.mxu0
        %v1141 = vadd.f32 %v1024, %v1135
        %v1142 = vadd.f32 %v1025, %v1138
        %s1143 = scalar_lea.vmem [#allocation7], 384
        %v1144 = vld [vmem:[%s1143] sm:$0xf]
        %v1145 = vld [vmem:[%s1143 + $0x4] sm:$0xf]
        %v1146 = vld [vmem:[%s1143 + $0x8] sm:$0xf]
        %v1147 = vld [vmem:[%s1143 + $0xc] sm:$0xf]
        %v1148 = vld [vmem:[%s1143 + $0x10] sm:$0xf]
        %v1149 = vld [vmem:[%s1143 + $0x14] sm:$0xf]
        %v1150 = vld [vmem:[%s1143 + $0x18] sm:$0xf]
        %v1151 = vld [vmem:[%s1143 + $0x1c] sm:$0xf]
        %v1152 = vld [vmem:[%s1143 + $0x20] sm:$0xf]
        %v1153 = vld [vmem:[%s1143 + $0x24] sm:$0xf]
        %v1154 = vld [vmem:[%s1143 + $0x28] sm:$0xf]
        %v1155 = vld [vmem:[%s1143 + $0x2c] sm:$0xf]
        %v1156 = vld [vmem:[%s1143 + $0x30] sm:$0xf]
        %v1157 = vld [vmem:[%s1143 + $0x34] sm:$0xf]
        %v1158 = vld [vmem:[%s1143 + $0x38] sm:$0xf]
        %v1159 = vld [vmem:[%s1143 + $0x3c] sm:$0xf]
        %vm1160 = vcmask 1044480
        %v1161 = vrot.slane %v445, 3
        %v1162 = vrot.slane %v451, 3
        %v1163 = vsel %vm1160, %v1161, %v1162
        %v1181 = vunpack.c.l.b16 %v1144
        %v1182 = vunpack.c.l.b16 %v1145
        %v1183 = vunpack.c.l.b16 %v1146
        %v1184 = vunpack.c.l.b16 %v1147
        %v1185 = vunpack.c.l.b16 %v1148
        %v1186 = vunpack.c.l.b16 %v1149
        %v1187 = vunpack.c.l.b16 %v1150
        %v1188 = vunpack.c.l.b16 %v1151
        %v1189 = vunpack.c.l.b16 %v1152
        %v1190 = vunpack.c.l.b16 %v1153
        %v1191 = vunpack.c.l.b16 %v1154
        %v1192 = vunpack.c.l.b16 %v1155
        %v1193 = vunpack.c.l.b16 %v1156
        %v1194 = vunpack.c.l.b16 %v1157
        %v1195 = vunpack.c.l.b16 %v1158
        %v1196 = vunpack.c.l.b16 %v1159
        %v1197 = vpack.c.b16 %v1182, %v1181
        %v1198 = vpack.c.b16 %v1184, %v1183
        %v1199 = vpack.c.b16 %v1186, %v1185
        %v1200 = vpack.c.b16 %v1188, %v1187
        %v1201 = vpack.c.b16 %v1190, %v1189
        %v1202 = vpack.c.b16 %v1192, %v1191
        %v1203 = vpack.c.b16 %v1194, %v1193
        %v1204 = vpack.c.b16 %v1196, %v1195
        %1213 = vmatprep.subr.bf16.mxu0 0
        %1214 = vmatpush1.bf16.msra.mxu0 %v1197
        %1215 = vmatprep.subr.bf16.mxu0 0
        %1216 = vmatpush1.bf16.msra.mxu0 %v1198
        %1217 = vmatprep.subr.bf16.mxu0 0
        %1218 = vmatpush1.bf16.msra.mxu0 %v1199
        %1219 = vmatprep.subr.bf16.mxu0 0
        %1220 = vmatpush1.bf16.msra.mxu0 %v1200
        %1221 = vmatprep.subr.bf16.mxu0 0
        %1222 = vmatpush1.bf16.msra.mxu0 %v1201
        %1223 = vmatprep.subr.bf16.mxu0 0
        %1224 = vmatpush1.bf16.msra.mxu0 %v1202
        %1225 = vmatprep.subr.bf16.mxu0 0
        %1226 = vmatpush1.bf16.msra.mxu0 %v1203
        %1227 = vmatprep.subr.bf16.mxu0 0
        %1228 = vmatpush1.bf16.msra.mxu0 %v1204
        %1229 = vmatprep.subr.bf16.mxu0 0
        %1230 = vmatpush1.bf16.msra.mxu0 0
        %1231 = vmatprep.subr.bf16.mxu0 0
        %1232 = vmatpush1.bf16.msra.mxu0 0
        %1233 = vmatprep.subr.bf16.mxu0 0
        %1234 = vmatpush1.bf16.msra.mxu0 0
        %1235 = vmatprep.subr.bf16.mxu0 0
        %1236 = vmatpush1.bf16.msra.mxu0 0
        %1237 = vmatprep.subr.bf16.mxu0 0
        %1238 = vmatpush1.bf16.msra.mxu0 0
        %1239 = vmatprep.subr.bf16.mxu0 0
        %1240 = vmatpush1.bf16.msra.mxu0 0
        %1241 = vmatprep.subr.bf16.mxu0 0
        %1242 = vmatpush1.bf16.msra.mxu0 0
        %1243 = vmatprep.subr.bf16.mxu0 0
        %1244 = vmatpush1.bf16.msra.mxu0 0
        %1245 = vmatprep.mubr.bf16.mxu0 0
        %1246 = vmatmul.mubr.bf16.gmra.mrb[0].mxu0 %v1163
        %v1247 = vpop.f32.mrb[0].mxu0
        %v1248 = vadd.f32 0.0, %v1247
        %v1249 = vpop.f32.mrb[0].mxu0
        %v1250 = vpop.f32.mrb[0].mxu0
        %v1251 = vadd.f32 0.0, %v1250
        %v1252 = vpop.f32.mrb[0].mxu0
        %1253 = vdwg.mxu0
        %v1254 = vadd.f32 %v1141, %v1248
        %v1255 = vadd.f32 %v1142, %v1251
        %v1256 = vld [vmem:[%s3] sm:$0x1]
        %v1258 = vlaneseq
        %v1259 = vshrl.u32 %v1258, 7
        %v1260 = vsub.s32 0, %v1259
        %v1261 = vrot.slane %v1256, %v1260
        %v1263 = vadd.f32 %v1254, %v1261
        %v1264 = vadd.f32 %v1255, %v1261
        %v1265 = vpack.c.bf16 %v1264, %v1263
        %v1266 = vld [vmem:[#allocation8] sm:$0xf]
        %v1267 = vld [vmem:[#allocation8 + $0x4] sm:$0xf]
        %v1268 = vld [vmem:[#allocation8 + $0x8] sm:$0xf]
        %v1269 = vld [vmem:[#allocation8 + $0xc] sm:$0xf]
        %v1270 = vld [vmem:[#allocation8 + $0x10] sm:$0xf]
        %v1271 = vld [vmem:[#allocation8 + $0x14] sm:$0xf]
        %v1272 = vld [vmem:[#allocation8 + $0x18] sm:$0xf]
        %v1273 = vld [vmem:[#allocation8 + $0x1c] sm:$0xf]
        %v1274 = vld [vmem:[#allocation8 + $0x20] sm:$0xf]
        %v1275 = vld [vmem:[#allocation8 + $0x24] sm:$0xf]
        %v1276 = vld [vmem:[#allocation8 + $0x28] sm:$0xf]
        %v1277 = vld [vmem:[#allocation8 + $0x2c] sm:$0xf]
        %v1278 = vld [vmem:[#allocation8 + $0x30] sm:$0xf]
        %v1279 = vld [vmem:[#allocation8 + $0x34] sm:$0xf]
        %v1280 = vld [vmem:[#allocation8 + $0x38] sm:$0xf]
        %v1281 = vld [vmem:[#allocation8 + $0x3c] sm:$0xf]
        %v1282 = vld [vmem:[%s5] sm:$0x1]
        %v1284 = vlaneseq
        %v1285 = vshrl.u32 %v1284, 7
        %v1286 = vsub.s32 0, %v1285
        %v1287 = vrot.slane %v1282, %v1286
        %v1305 = vunpack.c.l.b16 %v1266
        %v1306 = vunpack.c.l.b16 %v1267
        %v1307 = vunpack.c.l.b16 %v1268
        %v1308 = vunpack.c.l.b16 %v1269
        %v1309 = vunpack.c.l.b16 %v1270
        %v1310 = vunpack.c.l.b16 %v1271
        %v1311 = vunpack.c.l.b16 %v1272
        %v1312 = vunpack.c.l.b16 %v1273
        %v1313 = vunpack.c.l.b16 %v1274
        %v1314 = vunpack.c.l.b16 %v1275
        %v1315 = vunpack.c.l.b16 %v1276
        %v1316 = vunpack.c.l.b16 %v1277
        %v1317 = vunpack.c.l.b16 %v1278
        %v1318 = vunpack.c.l.b16 %v1279
        %v1319 = vunpack.c.l.b16 %v1280
        %v1320 = vunpack.c.l.b16 %v1281
        %v1321 = vpack.c.b16 %v1306, %v1305
        %v1322 = vpack.c.b16 %v1308, %v1307
        %v1323 = vpack.c.b16 %v1310, %v1309
        %v1324 = vpack.c.b16 %v1312, %v1311
        %v1325 = vpack.c.b16 %v1314, %v1313
        %v1326 = vpack.c.b16 %v1316, %v1315
        %v1327 = vpack.c.b16 %v1318, %v1317
        %v1328 = vpack.c.b16 %v1320, %v1319
        %1337 = vmatprep.subr.bf16.mxu0 0
        %1338 = vmatpush1.bf16.msra.mxu0 %v1321
        %1339 = vmatprep.subr.bf16.mxu0 0
        %1340 = vmatpush1.bf16.msra.mxu0 %v1322
        %1341 = vmatprep.subr.bf16.mxu0 0
        %1342 = vmatpush1.bf16.msra.mxu0 %v1323
        %1343 = vmatprep.subr.bf16.mxu0 0
        %1344 = vmatpush1.bf16.msra.mxu0 %v1324
        %1345 = vmatprep.subr.bf16.mxu0 0
        %1346 = vmatpush1.bf16.msra.mxu0 %v1325
        %1347 = vmatprep.subr.bf16.mxu0 0
        %1348 = vmatpush1.bf16.msra.mxu0 %v1326
        %1349 = vmatprep.subr.bf16.mxu0 0
        %1350 = vmatpush1.bf16.msra.mxu0 %v1327
        %1351 = vmatprep.subr.bf16.mxu0 0
        %1352 = vmatpush1.bf16.msra.mxu0 %v1328
        %1353 = vmatprep.subr.bf16.mxu0 0
        %1354 = vmatpush1.bf16.msra.mxu0 0
        %1355 = vmatprep.subr.bf16.mxu0 0
        %1356 = vmatpush1.bf16.msra.mxu0 0
        %1357 = vmatprep.subr.bf16.mxu0 0
        %1358 = vmatpush1.bf16.msra.mxu0 0
        %1359 = vmatprep.subr.bf16.mxu0 0
        %1360 = vmatpush1.bf16.msra.mxu0 0
        %1361 = vmatprep.subr.bf16.mxu0 0
        %1362 = vmatpush1.bf16.msra.mxu0 0
        %1363 = vmatprep.subr.bf16.mxu0 0
        %1364 = vmatpush1.bf16.msra.mxu0 0
        %1365 = vmatprep.subr.bf16.mxu0 0
        %1366 = vmatpush1.bf16.msra.mxu0 0
        %1367 = vmatprep.subr.bf16.mxu0 0
        %1368 = vmatpush1.bf16.msra.mxu0 0
        %1369 = vmatprep.mubr.bf16.mxu0 0
        %1370 = vmatmul.mubr.bf16.gmra.mrb[0].mxu0 %v1265
        %v1371 = vpop.f32.mrb[0].mxu0
        %v1372 = vadd.f32 %v1287, %v1371
        %v1373 = vpop.f32.mrb[0].mxu0
        %v1374 = vpop.f32.mrb[0].mxu0
        %v1375 = vadd.f32 %v1287, %v1374
        %v1376 = vpop.f32.mrb[0].mxu0
        %1377 = vdwg.mxu0
        %v1378 = vmul.f32 %v1372, 0.5
        %v1379 = vmul.f32 %v1375, 0.5
        %v1380 = vmul.f32 %v1372, %v1372
        %v1381 = vmul.f32 %v1375, %v1375
        %v1382 = vmul.f32 %v1380, %v1372
        %v1383 = vmul.f32 %v1381, %v1375
        %v1384 = vmul.f32 %v1382, 0.044715
        %v1385 = vmul.f32 %v1383, 0.044715
        %v1386 = vadd.f32 %v1372, %v1384
        %v1387 = vadd.f32 %v1375, %v1385
        %v1388 = vmul.f32 %v1386, 0.7978846
        %v1389 = vmul.f32 %v1387, 0.7978846
        %v1390 = vtanh.pop %v1388
        %v1391 = vtanh.pop %v1389
        %v1392 = vadd.f32 %v1390, 1.0
        %v1393 = vadd.f32 %v1391, 1.0
        %v1394 = vmul.f32 %v1378, %v1392
        %v1395 = vmul.f32 %v1379, %v1393
        %v1396 = vpack.c.bf16 %v1395, %v1394
        %v1397 = vld [vmem:[#allocation10] sm:$0xf]
        %v1398 = vld [vmem:[#allocation10 + $0x4] sm:$0xf]
        %v1399 = vld [vmem:[#allocation10 + $0x8] sm:$0xf]
        %v1400 = vld [vmem:[#allocation10 + $0xc] sm:$0xf]
        %v1401 = vld [vmem:[#allocation10 + $0x10] sm:$0xf]
        %v1402 = vld [vmem:[#allocation10 + $0x14] sm:$0xf]
        %v1403 = vld [vmem:[#allocation10 + $0x18] sm:$0xf]
        %v1404 = vld [vmem:[#allocation10 + $0x1c] sm:$0xf]
        %v1405 = vld [vmem:[#allocation10 + $0x20] sm:$0xf]
        %v1406 = vld [vmem:[#allocation10 + $0x24] sm:$0xf]
        %v1407 = vld [vmem:[#allocation10 + $0x28] sm:$0xf]
        %v1408 = vld [vmem:[#allocation10 + $0x2c] sm:$0xf]
        %v1409 = vld [vmem:[#allocation10 + $0x30] sm:$0xf]
        %v1410 = vld [vmem:[#allocation10 + $0x34] sm:$0xf]
        %v1411 = vld [vmem:[#allocation10 + $0x38] sm:$0xf]
        %v1412 = vld [vmem:[#allocation10 + $0x3c] sm:$0xf]
        %v1413 = vld [vmem:[%s7] sm:$0x1]
        %v1415 = vlaneseq
        %v1416 = vshrl.u32 %v1415, 7
        %v1417 = vsub.s32 0, %v1416
        %v1418 = vrot.slane %v1413, %v1417
        %v1436 = vunpack.c.l.b16 %v1397
        %v1437 = vunpack.c.l.b16 %v1398
        %v1438 = vunpack.c.l.b16 %v1399
        %v1439 = vunpack.c.l.b16 %v1400
        %v1440 = vunpack.c.l.b16 %v1401
        %v1441 = vunpack.c.l.b16 %v1402
        %v1442 = vunpack.c.l.b16 %v1403
        %v1443 = vunpack.c.l.b16 %v1404
        %v1444 = vunpack.c.l.b16 %v1405
        %v1445 = vunpack.c.l.b16 %v1406
        %v1446 = vunpack.c.l.b16 %v1407
        %v1447 = vunpack.c.l.b16 %v1408
        %v1448 = vunpack.c.l.b16 %v1409
        %v1449 = vunpack.c.l.b16 %v1410
        %v1450 = vunpack.c.l.b16 %v1411
        %v1451 = vunpack.c.l.b16 %v1412
        %v1452 = vpack.c.b16 %v1437, %v1436
        %v1453 = vpack.c.b16 %v1439, %v1438
        %v1454 = vpack.c.b16 %v1441, %v1440
        %v1455 = vpack.c.b16 %v1443, %v1442
        %v1456 = vpack.c.b16 %v1445, %v1444
        %v1457 = vpack.c.b16 %v1447, %v1446
        %v1458 = vpack.c.b16 %v1449, %v1448
        %v1459 = vpack.c.b16 %v1451, %v1450
        %1468 = vmatprep.subr.bf16.mxu0 0
        %1469 = vmatpush1.bf16.msra.mxu0 %v1452
        %1470 = vmatprep.subr.bf16.mxu0 0
        %1471 = vmatpush1.bf16.msra.mxu0 %v1453
        %1472 = vmatprep.subr.bf16.mxu0 0
        %1473 = vmatpush1.bf16.msra.mxu0 %v1454
        %1474 = vmatprep.subr.bf16.mxu0 0
        %1475 = vmatpush1.bf16.msra.mxu0 %v1455
        %1476 = vmatprep.subr.bf16.mxu0 0
        %1477 = vmatpush1.bf16.msra.mxu0 %v1456
        %1478 = vmatprep.subr.bf16.mxu0 0
        %1479 = vmatpush1.bf16.msra.mxu0 %v1457
        %1480 = vmatprep.subr.bf16.mxu0 0
        %1481 = vmatpush1.bf16.msra.mxu0 %v1458
        %1482 = vmatprep.subr.bf16.mxu0 0
        %1483 = vmatpush1.bf16.msra.mxu0 %v1459
        %1484 = vmatprep.subr.bf16.mxu0 0
        %1485 = vmatpush1.bf16.msra.mxu0 0
        %1486 = vmatprep.subr.bf16.mxu0 0
        %1487 = vmatpush1.bf16.msra.mxu0 0
        %1488 = vmatprep.subr.bf16.mxu0 0
        %1489 = vmatpush1.bf16.msra.mxu0 0
        %1490 = vmatprep.subr.bf16.mxu0 0
        %1491 = vmatpush1.bf16.msra.mxu0 0
        %1492 = vmatprep.subr.bf16.mxu0 0
        %1493 = vmatpush1.bf16.msra.mxu0 0
        %1494 = vmatprep.subr.bf16.mxu0 0
        %1495 = vmatpush1.bf16.msra.mxu0 0
        %1496 = vmatprep.subr.bf16.mxu0 0
        %1497 = vmatpush1.bf16.msra.mxu0 0
        %1498 = vmatprep.subr.bf16.mxu0 0
        %1499 = vmatpush1.bf16.msra.mxu0 0
        %1500 = vmatprep.mubr.bf16.mxu0 0
        %1501 = vmatmul.mubr.bf16.gmra.mrb[0].mxu0 %v1396
        %v1502 = vpop.f32.mrb[0].mxu0
        %v1503 = vadd.f32 %v1418, %v1502
        %v1504 = vpop.f32.mrb[0].mxu0
        %v1505 = vpop.f32.mrb[0].mxu0
        %v1506 = vadd.f32 %v1418, %v1505
        %v1507 = vpop.f32.mrb[0].mxu0
        %1508 = vdwg.mxu0
        %vm1512 = vcmask 1044480
        %v1513 = vrot.slane %v453, 3
        %v1514 = vrot.slane %v454, 3
        %v1515 = vsel %vm1512, %v1513, %v1514
        %v1516 = vrot.slane %v455, 3
        %v1517 = vsel %vm1512, %v1514, %v1516
        %v1520 = vadd.f32 %v1503, %v1515
        %v1521 = vadd.f32 %v1506, %v1517
        %1522 = vst [vmem:[%s431] sm:$0xff] %v1520
        %1523 = vst [vmem:[%s431 + $0x8] sm:$0xff] %v1521
        %s1524 = sand.u32 %s235, 1
        %s1525 = scalar_lea.sflag [#allocation4], %s1524
        %s1526 = sand.u32 %s235, 1
        %s1527 = smul.addr %s1526, 16
        %s1528 = scalar_lea.vmem [#allocation11], %s1527
        // Predicated region
        $region73: #{tpu_custom_call.1} parent=51 // pred_check
          %p1529 = pneg %p245
        $region74: #{tpu_custom_call.1} parent=51 // pred_check_branch
          %1531 = sbr.rel (%p1529) target = $region76
        $region75: #{tpu_custom_call.1} parent=51 // pred_region
          %s1532 = smul.u32 2, %s34
          %s1534 = ssub.s32 256, 256
          %1535 = vsyncadd %s1525, %s1534
          %s1536 = smul.addr %s33, 2
          %s1537 = sadd.s32 %s1532, %s1536
          %s1538 = smul.addr %s1537, 128
          %s1539 = scalar_lea.hbm %s8, %s1538
          %s1540 = sshll.u32 %s1528, 4
          %s1541 = int_to_ptr.vmem [resolvable:$true] %s1540
          %1546 = dma.vmem_to_hbm [thread:$0]  %s1541, 256, %s1539, %s1525, 128, 128, 8
        $region76: #{tpu_custom_call.1} parent=51 // pred_fallthru
          _
      $region52: #{tpu_custom_call.1} parent=5 // pred_fallthru
        _
      %p1547 = scmp.le.s32.totalorder 2, %s24
      // Predicated region
      $region77: #{tpu_custom_call.1} parent=5 // pred_check
        %p1548 = pneg %p1547
      $region78: #{tpu_custom_call.1} parent=5 // pred_check_branch
        %1550 = sbr.rel (%p1548) target = $region80
      $region79: #{tpu_custom_call.1} parent=5 // pred_region
        %s1551 = ssub.s32 %s24, 2
        // Predicated region
        $region81: #{tpu_custom_call.1} parent=79 // pred_check
          %p1552 = pneg %p251
        $region82: #{tpu_custom_call.1} parent=79 // pred_check_branch
          %1554 = sbr.rel (%p1552) target = $region84
        $region83: #{tpu_custom_call.1} parent=79 // pred_region
          %s1555 = sand.u32 %s236, 1
          %s1556 = scalar_lea.sflag [#allocation4], %s1555
          %s1557 = sand.u32 %s236, 1
          %s1558 = smul.addr %s1557, 16
          %s1559 = scalar_lea.vmem [#allocation11], %s1558
          %1560 = dma.done %s1556, 256
        $region84: #{tpu_custom_call.1} parent=79 // pred_fallthru
          _
      $region80: #{tpu_custom_call.1} parent=5 // pred_fallthru
        _
    $region6: #{tpu_custom_call.1} parent=1 // loop_footer
      %s28 = sadd.s32 1, %s24
    $region7: #{tpu_custom_call.1} parent=1 // loop_footer_branch
      %23 = sbr.rel target = $region3
    $region8: #{tpu_custom_call.1} parent=1 // loop_exit
      _
    %1561 = vsyncpa [#allocation3], 1
    %s1562 = scalar_lea.sflag [#allocation3], 1
    %1563 = vsyncpa %s1562, 1
    %1564 = vsyncpa [#allocation6], 1
    %s1565 = scalar_lea.sflag [#allocation6], 1
    %1566 = vsyncpa %s1565, 1
    %1567 = vsyncpa [#allocation9], 1
    %1568 = vsyncpa [#allocation4], 1
    %s1569 = scalar_lea.sflag [#allocation4], 1
    %1570 = vsyncpa %s1569, 1

</llo_original>
